<compile_context>
chip_gen: v5e
topology: v5e:2x2
jax: 0.10.0
libtpu: 0.0.40
codegen_flags: <defaults>
</compile_context>

<pallas_src>
import functools

import jax
import jax.numpy as jnp
from jax.experimental import pallas as pl
from jax.experimental.pallas import tpu as pltpu


def _cdiv(a, b):
    return -(-a // b)


def channel_attention_kernel(x_ref, w1t_ref, b1_ref, w2t_ref, b2_ref, o_ref,
                             sum_ref, max_ref, *, hw_total, needs_mask):
    """Grid = (N-block [parallel], HW-chunk [arbitrary / reduction]).

    x_ref   : (TN, C, THW) input chunk (any float dtype; accumulated in f32)
    w1t_ref : (C, Cr)  first 1x1-conv weight, transposed    b1_ref: (1, Cr)
    w2t_ref : (Cr, C)  second 1x1-conv weight, transposed   b2_ref: (1, C)
    o_ref   : (TN, C)  lane-dense output (written once per N block)
    sum_ref / max_ref : (TN, C, 128) f32 lane-shaped running accumulators
    """
    h = pl.program_id(1)
    tn, c, thw = x_ref.shape
    k = thw // 128

    x = x_ref[...].astype(jnp.float32)                # f32 accumulation
    x4 = x.reshape(tn, c, k, 128)

    if needs_mask:
        # Tail-chunk masking: padded positions contribute 0 to the sum and
        # -inf to the max (all-true for non-tail chunks).
        sub = jax.lax.broadcasted_iota(jnp.int32, (k, 128), 0)
        lane = jax.lax.broadcasted_iota(jnp.int32, (k, 128), 1)
        pos = h * thw + sub * 128 + lane
        valid = (pos < hw_total).reshape(1, 1, k, 128)
        xs = jnp.where(valid, x4, 0.0)
        xm = jnp.where(valid, x4, jnp.finfo(jnp.float32).min)
    else:
        xs = x4
        xm = x4

    # Reduce only across sub-chunks (axis=2): elementwise vreg combines; the
    # 128-lane cross-lane reduce is deferred to the finalize block.
    chunk_sum = jnp.sum(xs, axis=2)                   # (TN, C, 128)
    chunk_max = jnp.max(xm, axis=2)                   # (TN, C, 128)

    @pl.when(h == 0)
    def _init():
        sum_ref[...] = chunk_sum
        max_ref[...] = chunk_max

    @pl.when(h > 0)
    def _accumulate():
        sum_ref[...] = sum_ref[...] + chunk_sum
        max_ref[...] = jnp.maximum(max_ref[...], chunk_max)

    @pl.when(h == pl.num_programs(1) - 1)
    def _finalize():
        avg = jnp.sum(sum_ref[...], axis=-1) * (1.0 / hw_total)  # AvgPool2d(1)
        mx = jnp.max(max_ref[...], axis=-1)                      # MaxPool2d(1)
        # Stack avg/max so each shared-MLP layer is ONE matmul.
        pooled = jnp.concatenate([avg, mx], axis=0)              # (2*TN, C)
        hid = jnp.dot(pooled, w1t_ref[...],
                      preferred_element_type=jnp.float32) + b1_ref[...]
        hid = jnp.where(hid > 0, hid, 0.01 * hid)                # LeakyReLU(0.01)
        out = jnp.dot(hid, w2t_ref[...],
                      preferred_element_type=jnp.float32) + b2_ref[...]
        o_ref[...] = jax.nn.sigmoid(out[:tn] + out[tn:])


def _default_chunk_budget():
    """Per-chunk VMEM budget for the x block (2x double-buffer accounted)."""
    try:
        kind = jax.devices()[0].device_kind.lower()
    except Exception:
        kind = ""
    if "7" in kind:            # v7x: 64 MiB physical VMEM -> smaller chunks
        return 8 << 20
    return 14 << 20            # v5e/v6e: 128 MiB physical VMEM


def _pick_hw_tile(hw, tn, c, itemsize, budget_bytes):
    """Pick (THW, num_chunks): THW a multiple of 128, double-buffered x block
    within budget, chunks balanced so padding is confined to the tail chunk."""
    hw128 = _cdiv(hw, 128) * 128
    per_elem = 2 * tn * c * itemsize                 # 2x: BlockSpec double-buffers
    thw_cap = max(128, (budget_bytes // per_elem) // 128 * 128)
    if thw_cap >= hw128:
        return hw128, 1
    num = _cdiv(hw, thw_cap)
    thw = _cdiv(_cdiv(hw, num), 128) * 128
    return thw, _cdiv(hw, thw)


def channel_attention1(x_nchw, w1, b1, w2, b2, *, tn_max=8,
                       vmem_budget_bytes=None, hw_chunk=None):
    """x_nchw: (N, C, H, W) float32/bfloat16. Returns (N, C, 1, 1) float32."""
    N, C, H, W = x_nchw.shape
    HW = H * W
    Cr = w1.shape[0]

    x = x_nchw.reshape(N, C, HW)          # stream in native dtype (bf16 halves HBM bytes)
    itemsize = jnp.dtype(x.dtype).itemsize

    # --- N tiling (parallel axis; amortizes per-step grid overhead) ---
    if N <= tn_max:
        tn = N
        n_pad = N
    else:
        tn = tn_max                                   # multiple of 8
        n_pad = _cdiv(N, tn) * tn
    # TODO(synk): v7x small-batch (single N block) leaves the second TensorCore
    # idle; split the HW reduction into two partial accumulators combined in
    # the wrapper so both cores stream HBM when N <= tn_max.

    # --- HW tiling (reduction axis; lane-aligned, padded + masked tail) ---
    if vmem_budget_bytes is None:
        vmem_budget_bytes = _default_chunk_budget()
    if hw_chunk is not None:
        thw = max(128, (int(hw_chunk) // 128) * 128)
        num_hw = _cdiv(HW, thw)
    else:
        thw, num_hw = _pick_hw_tile(HW, tn, C, itemsize, vmem_budget_bytes)
    hw_pad = thw * num_hw
    needs_mask = hw_pad != HW

    pad_n = n_pad - N
    pad_hw = hw_pad - HW
    if pad_n or pad_hw:
        x = jnp.pad(x, ((0, pad_n), (0, 0), (0, pad_hw)))

    # Weights as plain matrices for batched (rows = samples) matmuls.
    w1t = w1.astype(jnp.float32).reshape(Cr, C).T     # (C, Cr)
    w2t = w2.astype(jnp.float32).reshape(C, Cr).T     # (Cr, C)
    b1r = b1.astype(jnp.float32).reshape(1, Cr)
    b2r = b2.astype(jnp.float32).reshape(1, C)

    kernel = functools.partial(channel_attention_kernel,
                               hw_total=HW, needs_mask=needs_mask)

    # VMEM ceiling: 2x double-buffered x block + scratch + weights + slack.
    x_block_bytes = tn * C * thw * itemsize
    scratch_bytes = 2 * tn * C * 128 * 4
    weight_bytes = 2 * (C * Cr + Cr + Cr * C + C) * 4
    vmem_limit = 2 * x_block_bytes + scratch_bytes + weight_bytes + (4 << 20)
    vmem_limit = int(min(max(vmem_limit, 8 << 20), 64 << 20))

    cost = pl.CostEstimate(
        flops=int(2 * n_pad * C * hw_pad + 8 * n_pad * C * Cr),
        transcendentals=int(n_pad * C),
        bytes_accessed=int(n_pad * C * hw_pad * itemsize + n_pad * C * 4),
    )

    out = pl.pallas_call(
        kernel,
        out_shape=jax.ShapeDtypeStruct((n_pad, C), jnp.float32),
        grid_spec=pltpu.PrefetchScalarGridSpec(
            num_scalar_prefetch=0,
            grid=(n_pad // tn, num_hw),
            in_specs=[
                pl.BlockSpec((tn, C, thw), lambda n, h: (n, 0, h)),
                pl.BlockSpec((C, Cr), lambda n, h: (0, 0)),
                pl.BlockSpec((1, Cr), lambda n, h: (0, 0)),
                pl.BlockSpec((Cr, C), lambda n, h: (0, 0)),
                pl.BlockSpec((1, C), lambda n, h: (0, 0)),
            ],
            # Output block constant along HW -> resident accumulator target,
            # written back once per N block (lane-dense (TN, C) slab).
            out_specs=pl.BlockSpec((tn, C), lambda n, h: (n, 0)),
            scratch_shapes=[
                pltpu.VMEM((tn, C, 128), jnp.float32),    # lane-shaped running sum
                pltpu.VMEM((tn, C, 128), jnp.float32),    # lane-shaped running max
            ],
        ),
        compiler_params=pltpu.CompilerParams(
            dimension_semantics=("parallel", "arbitrary"),
            vmem_limit_bytes=vmem_limit),
        cost_estimate=cost,
    )(x, w1t, b1r, w2t, b2r)

    return out[:N].reshape(N, C, 1, 1)


def reference(x_nchw, w1, b1, w2, b2):
    avg = jnp.mean(x_nchw, axis=(2, 3))               # (N, C)
    mx = jnp.max(x_nchw, axis=(2, 3))                 # (N, C)

    def mlp(v):                                       # v: (N, C)
        h = v @ w1.T + b1
        h = jnp.where(h > 0, h, 0.01 * h)
        return h @ w2.T + b2

    out = jax.nn.sigmoid(mlp(avg) + mlp(mx))
    return out.reshape(*out.shape, 1, 1)


if __name__ == "__main__":
    in_planes, ratio = 32, 4
    Cr = in_planes // ratio

    key = jax.random.PRNGKey(0)
    kx, k1, k2, k3, k4 = jax.random.split(key, 5)

    # Deterministic synthetic parameters for the two 1x1 convs (with bias).
    w1 = jax.random.normal(k1, (Cr, in_planes), dtype=jnp.float32) * 0.1
    b1 = jax.random.normal(k2, (Cr,), dtype=jnp.float32) * 0.1
    w2 = jax.random.normal(k3, (in_planes, Cr), dtype=jnp.float32) * 0.1
    b2 = jax.random.normal(k4, (in_planes,), dtype=jnp.float32) * 0.1

    # 1) HW a multiple of 128, single chunk.
    x = jax.random.normal(kx, (2, in_planes, 16, 16), dtype=jnp.float32)
    ref = reference(x, w1, b1, w2, b2)
    out = jax.block_until_ready(channel_attention1(x, w1, b1, w2, b2))
    assert out.shape == (2, in_planes, 1, 1)
    assert jnp.allclose(out, ref, atol=1e-5, rtol=1e-5), "mismatch (single chunk)"

    # 2) Multi-chunk reduction path (HW=256 split into 2 x 128 chunks).
    out2 = jax.block_until_ready(
        channel_attention1(x, w1, b1, w2, b2, hw_chunk=128))
    assert jnp.allclose(out2, ref, atol=1e-5, rtol=1e-5), "mismatch (tiled HW)"

    # 3) HW not a multiple of 128 -> padded HW + masked tail chunk.
    x3 = jax.random.normal(kx, (3, in_planes, 13, 11), dtype=jnp.float32)
    ref3 = reference(x3, w1, b1, w2, b2)
    out3 = jax.block_until_ready(channel_attention1(x3, w1, b1, w2, b2))
    assert jnp.allclose(out3, ref3, atol=1e-5, rtol=1e-5), "mismatch (masked tail)"
    out3b = jax.block_until_ready(
        channel_attention1(x3, w1, b1, w2, b2, hw_chunk=128))
    assert jnp.allclose(out3b, ref3, atol=1e-5, rtol=1e-5), "mismatch (masked tail, tiled)"

    # 4) bf16 activations streamed at half the HBM bytes (f32 accumulation).
    xb = x.astype(jnp.bfloat16)
    refb = reference(xb.astype(jnp.float32), w1, b1, w2, b2)
    outb = jax.block_until_ready(channel_attention1(xb, w1, b1, w2, b2))
    assert jnp.allclose(outb, refb, atol=5e-3, rtol=5e-3), "mismatch (bf16 input)"

    print("KERNEL_OK")
</pallas_src>

<mosaic_0001>
module attributes {stable_mosaic.version = 11 : i64} {
  func.func @channel_attention_kernel(%arg0: i32, %arg1: i32, %arg2: memref<2x32x256xf32, #tpu.memory_space<vmem>>, %arg3: memref<32x8xf32, #tpu.memory_space<vmem>>, %arg4: memref<1x8xf32, #tpu.memory_space<vmem>>, %arg5: memref<8x32xf32, #tpu.memory_space<vmem>>, %arg6: memref<1x32xf32, #tpu.memory_space<vmem>>, %arg7: memref<2x32xf32, #tpu.memory_space<vmem>>, %arg8: memref<2x32x128xf32, #tpu.memory_space<vmem>>, %arg9: memref<2x32x128xf32, #tpu.memory_space<vmem>>) attributes {dimension_semantics = [#tpu.dimension_semantics<parallel>, #tpu.dimension_semantics<arbitrary>], iteration_bounds = array<i64: 1, 1>, scalar_prefetch = 0 : i64, scratch_operands = 2 : i64, tpu.core_type = #tpu.core_type<tc>, window_params = [{transform_indices = @transform_0, window_bounds = array<i64: 2, 32, 256>}, {pipeline_mode = #tpu.pipeline_mode<synchronous>, transform_indices = @transform_1, window_bounds = array<i64: 32, 8>}, {pipeline_mode = #tpu.pipeline_mode<synchronous>, transform_indices = @transform_2, window_bounds = array<i64: 1, 8>}, {pipeline_mode = #tpu.pipeline_mode<synchronous>, transform_indices = @transform_3, window_bounds = array<i64: 8, 32>}, {pipeline_mode = #tpu.pipeline_mode<synchronous>, transform_indices = @transform_4, window_bounds = array<i64: 1, 32>}, {transform_indices = @transform_5, window_bounds = array<i64: 2, 32>}]} {
    %c0 = arith.constant 0 : index
    %c0_0 = arith.constant 0 : index
    %c0_1 = arith.constant 0 : index
    %0 = vector.load %arg2[%c0, %c0_0, %c0_1] : memref<2x32x256xf32, #tpu.memory_space<vmem>>, vector<2x32x256xf32>
    %1 = vector.shape_cast %0 : vector<2x32x256xf32> to vector<2x32x2x128xf32>
    %cst = arith.constant dense<0.000000e+00> : vector<2x32x128xf32>
    %2 = vector.multi_reduction <add>, %1, %cst [2] : vector<2x32x2x128xf32> to vector<2x32x128xf32>
    %cst_2 = arith.constant dense<0xFF800000> : vector<2x32x128xf32>
    %3 = vector.multi_reduction <maximumf>, %1, %cst_2 [2] : vector<2x32x2x128xf32> to vector<2x32x128xf32>
    %c0_i32 = arith.constant 0 : i32
    %4 = arith.cmpi eq, %arg1, %c0_i32 : i32
    %5 = arith.extui %4 : i1 to i32
    %c0_i32_3 = arith.constant 0 : i32
    %6 = arith.cmpi ne, %5, %c0_i32_3 : i32
    scf.if %6 {
      %c0_8 = arith.constant 0 : index
      %c0_9 = arith.constant 0 : index
      %c0_10 = arith.constant 0 : index
      %13 = vector.load %arg8[%c0_8, %c0_9, %c0_10] : memref<2x32x128xf32, #tpu.memory_space<vmem>>, vector<2x32x128xf32>
      tpu.vector_store %arg8[%c0_8, %c0_9, %c0_10], %2 {strides = array<i32>} : memref<2x32x128xf32, #tpu.memory_space<vmem>>, vector<2x32x128xf32>,
      %c0_11 = arith.constant 0 : index
      %c0_12 = arith.constant 0 : index
      %c0_13 = arith.constant 0 : index
      %14 = vector.load %arg9[%c0_11, %c0_12, %c0_13] : memref<2x32x128xf32, #tpu.memory_space<vmem>>, vector<2x32x128xf32>
      tpu.vector_store %arg9[%c0_11, %c0_12, %c0_13], %3 {strides = array<i32>} : memref<2x32x128xf32, #tpu.memory_space<vmem>>, vector<2x32x128xf32>,
    } else {
    }
    %c0_i32_4 = arith.constant 0 : i32
    %7 = arith.cmpi sgt, %arg1, %c0_i32_4 : i32
    %8 = arith.extui %7 : i1 to i32
    %c0_i32_5 = arith.constant 0 : i32
    %9 = arith.cmpi ne, %8, %c0_i32_5 : i32
    scf.if %9 {
      %c0_8 = arith.constant 0 : index
      %c0_9 = arith.constant 0 : index
      %c0_10 = arith.constant 0 : index
      %13 = vector.load %arg8[%c0_8, %c0_9, %c0_10] : memref<2x32x128xf32, #tpu.memory_space<vmem>>, vector<2x32x128xf32>
      %14 = arith.addf %13, %2 : vector<2x32x128xf32>
      %c0_11 = arith.constant 0 : index
      %c0_12 = arith.constant 0 : index
      %c0_13 = arith.constant 0 : index
      %15 = vector.load %arg8[%c0_11, %c0_12, %c0_13] : memref<2x32x128xf32, #tpu.memory_space<vmem>>, vector<2x32x128xf32>
      tpu.vector_store %arg8[%c0_11, %c0_12, %c0_13], %14 {strides = array<i32>} : memref<2x32x128xf32, #tpu.memory_space<vmem>>, vector<2x32x128xf32>,
      %c0_14 = arith.constant 0 : index
      %c0_15 = arith.constant 0 : index
      %c0_16 = arith.constant 0 : index
      %16 = vector.load %arg9[%c0_14, %c0_15, %c0_16] : memref<2x32x128xf32, #tpu.memory_space<vmem>>, vector<2x32x128xf32>
      %17 = arith.maximumf %16, %3 : vector<2x32x128xf32>
      %c0_17 = arith.constant 0 : index
      %c0_18 = arith.constant 0 : index
      %c0_19 = arith.constant 0 : index
      %18 = vector.load %arg9[%c0_17, %c0_18, %c0_19] : memref<2x32x128xf32, #tpu.memory_space<vmem>>, vector<2x32x128xf32>
      tpu.vector_store %arg9[%c0_17, %c0_18, %c0_19], %17 {strides = array<i32>} : memref<2x32x128xf32, #tpu.memory_space<vmem>>, vector<2x32x128xf32>,
    } else {
    }
    %c0_i32_6 = arith.constant 0 : i32
    %10 = arith.cmpi eq, %arg1, %c0_i32_6 : i32
    %11 = arith.extui %10 : i1 to i32
    %c0_i32_7 = arith.constant 0 : i32
    %12 = arith.cmpi ne, %11, %c0_i32_7 : i32
    scf.if %12 {
      %c0_8 = arith.constant 0 : index
      %c0_9 = arith.constant 0 : index
      %c0_10 = arith.constant 0 : index
      %13 = vector.load %arg8[%c0_8, %c0_9, %c0_10] : memref<2x32x128xf32, #tpu.memory_space<vmem>>, vector<2x32x128xf32>
      %cst_11 = arith.constant dense<0.000000e+00> : vector<2x32xf32>
      %14 = vector.multi_reduction <add>, %13, %cst_11 [2] : vector<2x32x128xf32> to vector<2x32xf32>
      %cst_12 = arith.constant 3.906250e-03 : f32
      %15 = vector.broadcast %cst_12 : f32 to vector<2x32xf32>
      %16 = arith.mulf %14, %15 : vector<2x32xf32>
      %c0_13 = arith.constant 0 : index
      %c0_14 = arith.constant 0 : index
      %c0_15 = arith.constant 0 : index
      %17 = vector.load %arg9[%c0_13, %c0_14, %c0_15] : memref<2x32x128xf32, #tpu.memory_space<vmem>>, vector<2x32x128xf32>
      %cst_16 = arith.constant dense<0xFF800000> : vector<2x32xf32>
      %18 = vector.multi_reduction <maximumf>, %17, %cst_16 [2] : vector<2x32x128xf32> to vector<2x32xf32>
      %19 = tpu.concatenate %16, %18 in 0 : vector<2x32xf32>, vector<2x32xf32> -> vector<4x32xf32>
      %c0_17 = arith.constant 0 : index
      %c0_18 = arith.constant 0 : index
      %20 = vector.load %arg3[%c0_17, %c0_18] : memref<32x8xf32, #tpu.memory_space<vmem>>, vector<32x8xf32>
      %cst_19 = arith.constant dense<0.000000e+00> : vector<4x8xf32>
      %21 = tpu.matmul %19, %20, %cst_19 {dimension_numbers = #tpu.dot_dimension_numbers<[1], [0], [0], [1], [0, 0, 1, 1], [], []>} : vector<4x32xf32>, vector<32x8xf32>, vector<4x8xf32> -> vector<4x8xf32>
      %c0_20 = arith.constant 0 : index
      %c0_21 = arith.constant 0 : index
      %22 = vector.load %arg4[%c0_20, %c0_21] : memref<1x8xf32, #tpu.memory_space<vmem>>, vector<1x8xf32>
      %23 = vector.broadcast %22 : vector<1x8xf32> to vector<4x8xf32>
      %24 = arith.addf %21, %23 : vector<4x8xf32>
      %cst_22 = arith.constant 0.000000e+00 : f32
      %25 = vector.broadcast %cst_22 : f32 to vector<4x8xf32>
      %26 = arith.cmpf ogt, %24, %25 : vector<4x8xf32>
      %cst_23 = arith.constant 0.00999999977 : f32
      %27 = vector.broadcast %cst_23 : f32 to vector<4x8xf32>
      %28 = arith.mulf %27, %24 : vector<4x8xf32>
      %29 = arith.select %26, %24, %28 : vector<4x8xi1>, vector<4x8xf32>
      %c0_24 = arith.constant 0 : index
      %c0_25 = arith.constant 0 : index
      %30 = vector.load %arg5[%c0_24, %c0_25] : memref<8x32xf32, #tpu.memory_space<vmem>>, vector<8x32xf32>
      %cst_26 = arith.constant dense<0.000000e+00> : vector<4x32xf32>
      %31 = tpu.matmul %29, %30, %cst_26 {dimension_numbers = #tpu.dot_dimension_numbers<[1], [0], [0], [1], [0, 0, 1, 1], [], []>} : vector<4x8xf32>, vector<8x32xf32>, vector<4x32xf32> -> vector<4x32xf32>
      %c0_27 = arith.constant 0 : index
      %c0_28 = arith.constant 0 : index
      %32 = vector.load %arg6[%c0_27, %c0_28] : memref<1x32xf32, #tpu.memory_space<vmem>>, vector<1x32xf32>
      %33 = vector.broadcast %32 : vector<1x32xf32> to vector<4x32xf32>
      %34 = arith.addf %31, %33 : vector<4x32xf32>
      %35 = vector.extract_strided_slice %34 {offsets = [0, 0], sizes = [2, 32], strides = [1, 1]} : vector<4x32xf32> to vector<2x32xf32>
      %36 = vector.extract_strided_slice %34 {offsets = [2, 0], sizes = [2, 32], strides = [1, 1]} : vector<4x32xf32> to vector<2x32xf32>
      %37 = arith.addf %35, %36 : vector<2x32xf32>
      %38 = arith.negf %37 : vector<2x32xf32>
      %39 = math.exp %38 : vector<2x32xf32>
      %cst_29 = arith.constant 1.000000e+00 : f32
      %40 = vector.broadcast %cst_29 : f32 to vector<2x32xf32>
      %41 = arith.addf %40, %39 : vector<2x32xf32>
      %42 = arith.divf %40, %41 : vector<2x32xf32>
      %c0_30 = arith.constant 0 : index
      %c0_31 = arith.constant 0 : index
      %43 = vector.load %arg7[%c0_30, %c0_31] : memref<2x32xf32, #tpu.memory_space<vmem>>, vector<2x32xf32>
      tpu.vector_store %arg7[%c0_30, %c0_31], %42 {strides = array<i32>} : memref<2x32xf32, #tpu.memory_space<vmem>>, vector<2x32xf32>,
    } else {
    }
    return
  }
  func.func @transform_0(%arg0: i32, %arg1: i32) -> (i32, i32, i32) {
    %c0_i32 = arith.constant 0 : i32
    %c0_i32_0 = arith.constant 0 : i32
    return %arg0, %c0_i32, %arg1 : i32, i32, i32
  }
  func.func @transform_1(%arg0: i32, %arg1: i32) -> (i32, i32) {
    %c0_i32 = arith.constant 0 : i32
    %c0_i32_0 = arith.constant 0 : i32
    %c0_i32_1 = arith.constant 0 : i32
    return %c0_i32, %c0_i32_0 : i32, i32
  }
  func.func @transform_2(%arg0: i32, %arg1: i32) -> (i32, i32) {
    %c0_i32 = arith.constant 0 : i32
    %c0_i32_0 = arith.constant 0 : i32
    %c0_i32_1 = arith.constant 0 : i32
    return %c0_i32, %c0_i32_0 : i32, i32
  }
  func.func @transform_3(%arg0: i32, %arg1: i32) -> (i32, i32) {
    %c0_i32 = arith.constant 0 : i32
    %c0_i32_0 = arith.constant 0 : i32
    %c0_i32_1 = arith.constant 0 : i32
    return %c0_i32, %c0_i32_0 : i32, i32
  }
  func.func @transform_4(%arg0: i32, %arg1: i32) -> (i32, i32) {
    %c0_i32 = arith.constant 0 : i32
    %c0_i32_0 = arith.constant 0 : i32
    %c0_i32_1 = arith.constant 0 : i32
    return %c0_i32, %c0_i32_0 : i32, i32
  }
  func.func @transform_5(%arg0: i32, %arg1: i32) -> (i32, i32) {
    %c0_i32 = arith.constant 0 : i32
    %c0_i32_0 = arith.constant 0 : i32
    return %arg0, %c0_i32 : i32, i32
  }
}

</mosaic_0001>

<llo_original>
// kernel: tpu_custom_call.1
$region0: #{tpu_custom_call.1}
  #allocation0 [shape = 'u32[]', space=smem, size = 0x4, offset = 0x4, fixed_abs, tag = 'smem constant byte address 0x4 - core index']
  #allocation1 [shape = 'u32[72,128]{1,0:T(1,128)}', space=vmem, size = 0x9000, scoped, tag = 'internal scratch']
  #allocation2 [shape = 'f32[2,32,128]{2,1,0:T(8,128)}', space=vmem, size = 0x8000, scoped, tag = 'scratch operand']
  #allocation3 [shape = 'f32[2,32,128]{2,1,0:T(8,128)}', space=vmem, size = 0x8000, scoped, tag = 'scratch operand']
  %s0 = inlined_call_operand.hbm [shape: f32[2,32,256], index: 0, kind: input, shape index: {}]
  %s1 = inlined_call_operand.vmem [shape: f32[32,8], index: 1, kind: input, shape index: {}]
  %s2 = inlined_call_operand.vmem [shape: f32[1,8], index: 2, kind: input, shape index: {}]
  %s3 = inlined_call_operand.vmem [shape: f32[8,32], index: 3, kind: input, shape index: {}]
  %s4 = inlined_call_operand.vmem [shape: f32[1,32], index: 4, kind: input, shape index: {}]
  %s5 = inlined_call_operand.hbm [shape: f32[2,32], index: 5, kind: output, shape index: {}]
  %s6 = sld [smem:[#allocation0]]
  $region46: #{tpu_custom_call.1} parent=0
    _
  %s8 = ssub.s32 1, %s6
  %s9 = scalar_select 0, %s8, %s6
  $region1: #{tpu_custom_call.1} parent=0
    #allocation4 [shape = 'u8[65536]{0}', space=vmem, size = 0x10000, scoped, tag = 'input window, operand 0, single buffered']
    #allocation5 [shape = 's32[1]{0}', space=sflag, size = 0x4, scoped, tag = 'scoped memory for tpu_custom_call.1']
    #allocation6 [shape = 's32[1]{0}', space=sflag, size = 0x4, scoped, tag = 'scoped memory for tpu_custom_call.1']
    #allocation7 [shape = 'u8[1024]{0}', space=vmem, size = 0x400, scoped, tag = 'output window, operand 0, single buffered']
    %10 = vsyncpa [#allocation5], 0
    %11 = vsyncpa [#allocation6], 0
    // Predicated region
    $region2: #{tpu_custom_call.1} parent=1 // pred_check
      _
    $region3: #{tpu_custom_call.1} parent=1 // pred_check_branch
      %13 = sbr.rel (0) target = $region5
    $region4: #{tpu_custom_call.1} parent=1 // pred_region
      %15 = vsyncadd [#allocation5], 0
      %s16 = sshll.u32 %s0, 4
      %s17 = int_to_ptr.hbm [resolvable:$true] %s16
      %s18 = sshll.u32 [#allocation4], 4
      %s19 = int_to_ptr.vmem [resolvable:$true] %s18
      %24 = dma.hbm_to_vmem [thread:$0]  %s17, 2048, %s19, [#allocation5], 256, 256, 16
    $region5: #{tpu_custom_call.1} parent=1 // pred_fallthru
      _
    // Predicated region
    $region6: #{tpu_custom_call.1} parent=1 // pred_check
      _
    $region7: #{tpu_custom_call.1} parent=1 // pred_check_branch
      %26 = sbr.rel (0) target = $region9
    $region8: #{tpu_custom_call.1} parent=1 // pred_region
      _
    $region9: #{tpu_custom_call.1} parent=1 // pred_fallthru
      _
    // Predicated region
    $region10: #{tpu_custom_call.1} parent=1 // pred_check
      _
    $region11: #{tpu_custom_call.1} parent=1 // pred_check_branch
      %28 = sbr.rel (0) target = $region13
    $region12: #{tpu_custom_call.1} parent=1 // pred_region
      _
    $region13: #{tpu_custom_call.1} parent=1 // pred_fallthru
      _
    // Predicated region
    $region14: #{tpu_custom_call.1} parent=1 // pred_check
      _
    $region15: #{tpu_custom_call.1} parent=1 // pred_check_branch
      %30 = sbr.rel (0) target = $region17
    $region16: #{tpu_custom_call.1} parent=1 // pred_region
      _
    $region17: #{tpu_custom_call.1} parent=1 // pred_fallthru
      _
    // Predicated region
    $region18: #{tpu_custom_call.1} parent=1 // pred_check
      _
    $region19: #{tpu_custom_call.1} parent=1 // pred_check_branch
      %32 = sbr.rel (0) target = $region21
    $region20: #{tpu_custom_call.1} parent=1 // pred_region
      _
    $region21: #{tpu_custom_call.1} parent=1 // pred_fallthru
      _
    // Predicated region
    $region22: #{tpu_custom_call.1} parent=1 // pred_check
      _
    $region23: #{tpu_custom_call.1} parent=1 // pred_check_branch
      %34 = sbr.rel (0) target = $region25
    $region24: #{tpu_custom_call.1} parent=1 // pred_region
      %36 = dma.done [#allocation5], 2048
    $region25: #{tpu_custom_call.1} parent=1 // pred_fallthru
      _
    %v37 = vld [vmem:[#allocation4] sm:$0xff]
    %v38 = vld [vmem:[#allocation4 + $0x8] sm:$0xff]
    %v39 = vld [vmem:[#allocation4 + $0x10] sm:$0xff]
    %v40 = vld [vmem:[#allocation4 + $0x18] sm:$0xff]
    %v41 = vld [vmem:[#allocation4 + $0x20] sm:$0xff]
    %v42 = vld [vmem:[#allocation4 + $0x28] sm:$0xff]
    %v43 = vld [vmem:[#allocation4 + $0x30] sm:$0xff]
    %v44 = vld [vmem:[#allocation4 + $0x38] sm:$0xff]
    %v45 = vld [vmem:[#allocation4 + $0x40] sm:$0xff]
    %v46 = vld [vmem:[#allocation4 + $0x48] sm:$0xff]
    %v47 = vld [vmem:[#allocation4 + $0x50] sm:$0xff]
    %v48 = vld [vmem:[#allocation4 + $0x58] sm:$0xff]
    %v49 = vld [vmem:[#allocation4 + $0x60] sm:$0xff]
    %v50 = vld [vmem:[#allocation4 + $0x68] sm:$0xff]
    %v51 = vld [vmem:[#allocation4 + $0x70] sm:$0xff]
    %v52 = vld [vmem:[#allocation4 + $0x78] sm:$0xff]
    %v53 = vrot.slane %v37, 4
    %vm54 = vcmask 1047556
    %v55 = vsel %vm54, 0.0, %v53
    %v57 = vunpack.c.l.s4 1983009808
    %v58 = vunpack.c.0.s8 %v57
    %v59 = vperm.slane %v37, %v58
    %v61 = vunpack.c.l.s4 1983009808
    %v62 = vunpack.c.0.s8 %v61
    %v63 = vperm.slane %v55, %v62
    %v64 = vrot.slane %v38, 4
    %v65 = vsel %vm54, 0.0, %v64
    %v67 = vunpack.c.l.s4 1983009808
    %v68 = vunpack.c.0.s8 %v67
    %v69 = vperm.slane %v38, %v68
    %v71 = vunpack.c.l.s4 1983009808
    %v72 = vunpack.c.0.s8 %v71
    %v73 = vperm.slane %v65, %v72
    %v74 = vrot.slane %v69, 4
    %v75 = vsel %vm54, %v74, %v59
    %v76 = vrot.slane %v59, 4
    %v77 = vsel %vm54, %v69, %v76
    %v79 = vunpack.c.l.s4 1934713408
    %v80 = vunpack.c.0.s8 %v79
    %v81 = vperm.slane %v75, %v80
    %v83 = vunpack.c.l.s4 1934713408
    %v84 = vunpack.c.0.s8 %v83
    %v85 = vperm.slane %v77, %v84
    %v86 = vrot.slane %v73, 4
    %v87 = vsel %vm54, %v86, %v63
    %v88 = vrot.slane %v63, 4
    %v89 = vsel %vm54, %v73, %v88
    %v91 = vunpack.c.l.s4 1934713408
    %v92 = vunpack.c.0.s8 %v91
    %v93 = vperm.slane %v87, %v92
    %v95 = vunpack.c.l.s4 1934713408
    %v96 = vunpack.c.0.s8 %v95
    %v97 = vperm.slane %v89, %v96
    %v98 = vrot.slane %v81, 4
    %v99 = vsel %vm54, 0.0, %v98
    %v100 = vrot.slane %v85, 4
    %v101 = vsel %vm54, 0.0, %v100
    %v102 = vrot.slane %v93, 4
    %v103 = vsel %vm54, 0.0, %v102
    %v104 = vrot.slane %v97, 4
    %v105 = vsel %vm54, 0.0, %v104
    %v106 = vrot.slane %v39, 4
    %v107 = vsel %vm54, 0.0, %v106
    %v109 = vunpack.c.l.s4 1983009808
    %v110 = vunpack.c.0.s8 %v109
    %v111 = vperm.slane %v39, %v110
    %v113 = vunpack.c.l.s4 1983009808
    %v114 = vunpack.c.0.s8 %v113
    %v115 = vperm.slane %v107, %v114
    %v116 = vrot.slane %v40, 4
    %v117 = vsel %vm54, 0.0, %v116
    %v119 = vunpack.c.l.s4 1983009808
    %v120 = vunpack.c.0.s8 %v119
    %v121 = vperm.slane %v40, %v120
    %v123 = vunpack.c.l.s4 1983009808
    %v124 = vunpack.c.0.s8 %v123
    %v125 = vperm.slane %v117, %v124
    %v126 = vrot.slane %v121, 4
    %v127 = vsel %vm54, %v126, %v111
    %v128 = vrot.slane %v111, 4
    %v129 = vsel %vm54, %v121, %v128
    %v131 = vunpack.c.l.s4 1934713408
    %v132 = vunpack.c.0.s8 %v131
    %v133 = vperm.slane %v127, %v132
    %v135 = vunpack.c.l.s4 1934713408
    %v136 = vunpack.c.0.s8 %v135
    %v137 = vperm.slane %v129, %v136
    %v138 = vrot.slane %v125, 4
    %v139 = vsel %vm54, %v138, %v115
    %v140 = vrot.slane %v115, 4
    %v141 = vsel %vm54, %v125, %v140
    %v143 = vunpack.c.l.s4 1934713408
    %v144 = vunpack.c.0.s8 %v143
    %v145 = vperm.slane %v139, %v144
    %v147 = vunpack.c.l.s4 1934713408
    %v148 = vunpack.c.0.s8 %v147
    %v149 = vperm.slane %v141, %v148
    %v150 = vrot.slane %v133, 4
    %v151 = vsel %vm54, 0.0, %v150
    %v152 = vrot.slane %v137, 4
    %v153 = vsel %vm54, 0.0, %v152
    %v154 = vrot.slane %v145, 4
    %v155 = vsel %vm54, 0.0, %v154
    %v156 = vrot.slane %v149, 4
    %v157 = vsel %vm54, 0.0, %v156
    %v158 = vrot.slane %v41, 4
    %v159 = vsel %vm54, 0.0, %v158
    %v161 = vunpack.c.l.s4 1983009808
    %v162 = vunpack.c.0.s8 %v161
    %v163 = vperm.slane %v41, %v162
    %v165 = vunpack.c.l.s4 1983009808
    %v166 = vunpack.c.0.s8 %v165
    %v167 = vperm.slane %v159, %v166
    %v168 = vrot.slane %v42, 4
    %v169 = vsel %vm54, 0.0, %v168
    %v171 = vunpack.c.l.s4 1983009808
    %v172 = vunpack.c.0.s8 %v171
    %v173 = vperm.slane %v42, %v172
    %v175 = vunpack.c.l.s4 1983009808
    %v176 = vunpack.c.0.s8 %v175
    %v177 = vperm.slane %v169, %v176
    %v178 = vrot.slane %v173, 4
    %v179 = vsel %vm54, %v178, %v163
    %v180 = vrot.slane %v163, 4
    %v181 = vsel %vm54, %v173, %v180
    %v183 = vunpack.c.l.s4 1934713408
    %v184 = vunpack.c.0.s8 %v183
    %v185 = vperm.slane %v179, %v184
    %v187 = vunpack.c.l.s4 1934713408
    %v188 = vunpack.c.0.s8 %v187
    %v189 = vperm.slane %v181, %v188
    %v190 = vrot.slane %v177, 4
    %v191 = vsel %vm54, %v190, %v167
    %v192 = vrot.slane %v167, 4
    %v193 = vsel %vm54, %v177, %v192
    %v195 = vunpack.c.l.s4 1934713408
    %v196 = vunpack.c.0.s8 %v195
    %v197 = vperm.slane %v191, %v196
    %v199 = vunpack.c.l.s4 1934713408
    %v200 = vunpack.c.0.s8 %v199
    %v201 = vperm.slane %v193, %v200
    %v202 = vrot.slane %v185, 4
    %v203 = vsel %vm54, 0.0, %v202
    %v204 = vrot.slane %v189, 4
    %v205 = vsel %vm54, 0.0, %v204
    %v206 = vrot.slane %v197, 4
    %v207 = vsel %vm54, 0.0, %v206
    %v208 = vrot.slane %v201, 4
    %v209 = vsel %vm54, 0.0, %v208
    %v210 = vrot.slane %v43, 4
    %v211 = vsel %vm54, 0.0, %v210
    %v213 = vunpack.c.l.s4 1983009808
    %v214 = vunpack.c.0.s8 %v213
    %v215 = vperm.slane %v43, %v214
    %v217 = vunpack.c.l.s4 1983009808
    %v218 = vunpack.c.0.s8 %v217
    %v219 = vperm.slane %v211, %v218
    %v220 = vrot.slane %v44, 4
    %v221 = vsel %vm54, 0.0, %v220
    %v223 = vunpack.c.l.s4 1983009808
    %v224 = vunpack.c.0.s8 %v223
    %v225 = vperm.slane %v44, %v224
    %v227 = vunpack.c.l.s4 1983009808
    %v228 = vunpack.c.0.s8 %v227
    %v229 = vperm.slane %v221, %v228
    %v230 = vrot.slane %v225, 4
    %v231 = vsel %vm54, %v230, %v215
    %v232 = vrot.slane %v215, 4
    %v233 = vsel %vm54, %v225, %v232
    %v235 = vunpack.c.l.s4 1934713408
    %v236 = vunpack.c.0.s8 %v235
    %v237 = vperm.slane %v231, %v236
    %v239 = vunpack.c.l.s4 1934713408
    %v240 = vunpack.c.0.s8 %v239
    %v241 = vperm.slane %v233, %v240
    %v242 = vrot.slane %v229, 4
    %v243 = vsel %vm54, %v242, %v219
    %v244 = vrot.slane %v219, 4
    %v245 = vsel %vm54, %v229, %v244
    %v247 = vunpack.c.l.s4 1934713408
    %v248 = vunpack.c.0.s8 %v247
    %v249 = vperm.slane %v243, %v248
    %v251 = vunpack.c.l.s4 1934713408
    %v252 = vunpack.c.0.s8 %v251
    %v253 = vperm.slane %v245, %v252
    %v254 = vrot.slane %v237, 4
    %v255 = vsel %vm54, 0.0, %v254
    %v256 = vrot.slane %v241, 4
    %v257 = vsel %vm54, 0.0, %v256
    %v258 = vrot.slane %v249, 4
    %v259 = vsel %vm54, 0.0, %v258
    %v260 = vrot.slane %v253, 4
    %v261 = vsel %vm54, 0.0, %v260
    %v262 = vrot.slane %v45, 4
    %v263 = vsel %vm54, 0.0, %v262
    %v265 = vunpack.c.l.s4 1983009808
    %v266 = vunpack.c.0.s8 %v265
    %v267 = vperm.slane %v45, %v266
    %v269 = vunpack.c.l.s4 1983009808
    %v270 = vunpack.c.0.s8 %v269
    %v271 = vperm.slane %v263, %v270
    %v272 = vrot.slane %v46, 4
    %v273 = vsel %vm54, 0.0, %v272
    %v275 = vunpack.c.l.s4 1983009808
    %v276 = vunpack.c.0.s8 %v275
    %v277 = vperm.slane %v46, %v276
    %v279 = vunpack.c.l.s4 1983009808
    %v280 = vunpack.c.0.s8 %v279
    %v281 = vperm.slane %v273, %v280
    %v282 = vrot.slane %v277, 4
    %v283 = vsel %vm54, %v282, %v267
    %v284 = vrot.slane %v267, 4
    %v285 = vsel %vm54, %v277, %v284
    %v287 = vunpack.c.l.s4 1934713408
    %v288 = vunpack.c.0.s8 %v287
    %v289 = vperm.slane %v283, %v288
    %v291 = vunpack.c.l.s4 1934713408
    %v292 = vunpack.c.0.s8 %v291
    %v293 = vperm.slane %v285, %v292
    %v294 = vrot.slane %v281, 4
    %v295 = vsel %vm54, %v294, %v271
    %v296 = vrot.slane %v271, 4
    %v297 = vsel %vm54, %v281, %v296
    %v299 = vunpack.c.l.s4 1934713408
    %v300 = vunpack.c.0.s8 %v299
    %v301 = vperm.slane %v295, %v300
    %v303 = vunpack.c.l.s4 1934713408
    %v304 = vunpack.c.0.s8 %v303
    %v305 = vperm.slane %v297, %v304
    %v306 = vrot.slane %v289, 4
    %v307 = vsel %vm54, 0.0, %v306
    %v308 = vrot.slane %v293, 4
    %v309 = vsel %vm54, 0.0, %v308
    %v310 = vrot.slane %v301, 4
    %v311 = vsel %vm54, 0.0, %v310
    %v312 = vrot.slane %v305, 4
    %v313 = vsel %vm54, 0.0, %v312
    %v314 = vrot.slane %v47, 4
    %v315 = vsel %vm54, 0.0, %v314
    %v317 = vunpack.c.l.s4 1983009808
    %v318 = vunpack.c.0.s8 %v317
    %v319 = vperm.slane %v47, %v318
    %v321 = vunpack.c.l.s4 1983009808
    %v322 = vunpack.c.0.s8 %v321
    %v323 = vperm.slane %v315, %v322
    %v324 = vrot.slane %v48, 4
    %v325 = vsel %vm54, 0.0, %v324
    %v327 = vunpack.c.l.s4 1983009808
    %v328 = vunpack.c.0.s8 %v327
    %v329 = vperm.slane %v48, %v328
    %v331 = vunpack.c.l.s4 1983009808
    %v332 = vunpack.c.0.s8 %v331
    %v333 = vperm.slane %v325, %v332
    %v334 = vrot.slane %v329, 4
    %v335 = vsel %vm54, %v334, %v319
    %v336 = vrot.slane %v319, 4
    %v337 = vsel %vm54, %v329, %v336
    %v339 = vunpack.c.l.s4 1934713408
    %v340 = vunpack.c.0.s8 %v339
    %v341 = vperm.slane %v335, %v340
    %v343 = vunpack.c.l.s4 1934713408
    %v344 = vunpack.c.0.s8 %v343
    %v345 = vperm.slane %v337, %v344
    %v346 = vrot.slane %v333, 4
    %v347 = vsel %vm54, %v346, %v323
    %v348 = vrot.slane %v323, 4
    %v349 = vsel %vm54, %v333, %v348
    %v351 = vunpack.c.l.s4 1934713408
    %v352 = vunpack.c.0.s8 %v351
    %v353 = vperm.slane %v347, %v352
    %v355 = vunpack.c.l.s4 1934713408
    %v356 = vunpack.c.0.s8 %v355
    %v357 = vperm.slane %v349, %v356
    %v358 = vrot.slane %v341, 4
    %v359 = vsel %vm54, 0.0, %v358
    %v360 = vrot.slane %v345, 4
    %v361 = vsel %vm54, 0.0, %v360
    %v362 = vrot.slane %v353, 4
    %v363 = vsel %vm54, 0.0, %v362
    %v364 = vrot.slane %v357, 4
    %v365 = vsel %vm54, 0.0, %v364
    %v366 = vrot.slane %v49, 4
    %v367 = vsel %vm54, 0.0, %v366
    %v369 = vunpack.c.l.s4 1983009808
    %v370 = vunpack.c.0.s8 %v369
    %v371 = vperm.slane %v49, %v370
    %v373 = vunpack.c.l.s4 1983009808
    %v374 = vunpack.c.0.s8 %v373
    %v375 = vperm.slane %v367, %v374
    %v376 = vrot.slane %v50, 4
    %v377 = vsel %vm54, 0.0, %v376
    %v379 = vunpack.c.l.s4 1983009808
    %v380 = vunpack.c.0.s8 %v379
    %v381 = vperm.slane %v50, %v380
    %v383 = vunpack.c.l.s4 1983009808
    %v384 = vunpack.c.0.s8 %v383
    %v385 = vperm.slane %v377, %v384
    %v386 = vrot.slane %v381, 4
    %v387 = vsel %vm54, %v386, %v371
    %v388 = vrot.slane %v371, 4
    %v389 = vsel %vm54, %v381, %v388
    %v391 = vunpack.c.l.s4 1934713408
    %v392 = vunpack.c.0.s8 %v391
    %v393 = vperm.slane %v387, %v392
    %v395 = vunpack.c.l.s4 1934713408
    %v396 = vunpack.c.0.s8 %v395
    %v397 = vperm.slane %v389, %v396
    %v398 = vrot.slane %v385, 4
    %v399 = vsel %vm54, %v398, %v375
    %v400 = vrot.slane %v375, 4
    %v401 = vsel %vm54, %v385, %v400
    %v403 = vunpack.c.l.s4 1934713408
    %v404 = vunpack.c.0.s8 %v403
    %v405 = vperm.slane %v399, %v404
    %v407 = vunpack.c.l.s4 1934713408
    %v408 = vunpack.c.0.s8 %v407
    %v409 = vperm.slane %v401, %v408
    %v410 = vrot.slane %v393, 4
    %v411 = vsel %vm54, 0.0, %v410
    %v412 = vrot.slane %v397, 4
    %v413 = vsel %vm54, 0.0, %v412
    %v414 = vrot.slane %v405, 4
    %v415 = vsel %vm54, 0.0, %v414
    %v416 = vrot.slane %v409, 4
    %v417 = vsel %vm54, 0.0, %v416
    %v418 = vrot.slane %v51, 4
    %v419 = vsel %vm54, 0.0, %v418
    %v421 = vunpack.c.l.s4 1983009808
    %v422 = vunpack.c.0.s8 %v421
    %v423 = vperm.slane %v51, %v422
    %v425 = vunpack.c.l.s4 1983009808
    %v426 = vunpack.c.0.s8 %v425
    %v427 = vperm.slane %v419, %v426
    %v428 = vrot.slane %v52, 4
    %v429 = vsel %vm54, 0.0, %v428
    %v431 = vunpack.c.l.s4 1983009808
    %v432 = vunpack.c.0.s8 %v431
    %v433 = vperm.slane %v52, %v432
    %v435 = vunpack.c.l.s4 1983009808
    %v436 = vunpack.c.0.s8 %v435
    %v437 = vperm.slane %v429, %v436
    %v438 = vrot.slane %v433, 4
    %v439 = vsel %vm54, %v438, %v423
    %v440 = vrot.slane %v423, 4
    %v441 = vsel %vm54, %v433, %v440
    %v443 = vunpack.c.l.s4 1934713408
    %v444 = vunpack.c.0.s8 %v443
    %v445 = vperm.slane %v439, %v444
    %v447 = vunpack.c.l.s4 1934713408
    %v448 = vunpack.c.0.s8 %v447
    %v449 = vperm.slane %v441, %v448
    %v450 = vrot.slane %v437, 4
    %v451 = vsel %vm54, %v450, %v427
    %v452 = vrot.slane %v427, 4
    %v453 = vsel %vm54, %v437, %v452
    %v455 = vunpack.c.l.s4 1934713408
    %v456 = vunpack.c.0.s8 %v455
    %v457 = vperm.slane %v451, %v456
    %v459 = vunpack.c.l.s4 1934713408
    %v460 = vunpack.c.0.s8 %v459
    %v461 = vperm.slane %v453, %v460
    %v462 = vrot.slane %v445, 4
    %v463 = vsel %vm54, 0.0, %v462
    %v464 = vrot.slane %v449, 4
    %v465 = vsel %vm54, 0.0, %v464
    %v466 = vrot.slane %v457, 4
    %v467 = vsel %vm54, 0.0, %v466
    %v468 = vrot.slane %v461, 4
    %v469 = vsel %vm54, 0.0, %v468
    %vm470 = vcmask 1041408
    %v471 = vsel %vm470, %v81, 0.0
    %v472 = vrot.slane %v471, 4
    %v473 = vadd.f32 %v471, %v472
    %v474 = vrot.slane %v473, 2
    %v475 = vadd.f32 %v473, %v474
    %v476 = vrot.slane %v475, 1
    %v477 = vadd.f32 %v475, %v476
    %v478 = vsel %vm470, %v99, 0.0
    %v479 = vrot.slane %v478, 4
    %v480 = vadd.f32 %v478, %v479
    %v481 = vrot.slane %v480, 2
    %v482 = vadd.f32 %v480, %v481
    %v483 = vrot.slane %v482, 1
    %v484 = vadd.f32 %v482, %v483
    %v485 = vsel %vm470, %v85, 0.0
    %v486 = vrot.slane %v485, 4
    %v487 = vadd.f32 %v485, %v486
    %v488 = vrot.slane %v487, 2
    %v489 = vadd.f32 %v487, %v488
    %v490 = vrot.slane %v489, 1
    %v491 = vadd.f32 %v489, %v490
    %v492 = vsel %vm470, %v101, 0.0
    %v493 = vrot.slane %v492, 4
    %v494 = vadd.f32 %v492, %v493
    %v495 = vrot.slane %v494, 2
    %v496 = vadd.f32 %v494, %v495
    %v497 = vrot.slane %v496, 1
    %v498 = vadd.f32 %v496, %v497
    %v499 = vsel %vm470, %v93, 0.0
    %v500 = vrot.slane %v499, 4
    %v501 = vadd.f32 %v499, %v500
    %v502 = vrot.slane %v501, 2
    %v503 = vadd.f32 %v501, %v502
    %v504 = vrot.slane %v503, 1
    %v505 = vadd.f32 %v503, %v504
    %v506 = vsel %vm470, %v103, 0.0
    %v507 = vrot.slane %v506, 4
    %v508 = vadd.f32 %v506, %v507
    %v509 = vrot.slane %v508, 2
    %v510 = vadd.f32 %v508, %v509
    %v511 = vrot.slane %v510, 1
    %v512 = vadd.f32 %v510, %v511
    %v513 = vsel %vm470, %v97, 0.0
    %v514 = vrot.slane %v513, 4
    %v515 = vadd.f32 %v513, %v514
    %v516 = vrot.slane %v515, 2
    %v517 = vadd.f32 %v515, %v516
    %v518 = vrot.slane %v517, 1
    %v519 = vadd.f32 %v517, %v518
    %v520 = vsel %vm470, %v105, 0.0
    %v521 = vrot.slane %v520, 4
    %v522 = vadd.f32 %v520, %v521
    %v523 = vrot.slane %v522, 2
    %v524 = vadd.f32 %v522, %v523
    %v525 = vrot.slane %v524, 1
    %v526 = vadd.f32 %v524, %v525
    %v527 = vsel %vm470, %v133, 0.0
    %v528 = vrot.slane %v527, 4
    %v529 = vadd.f32 %v527, %v528
    %v530 = vrot.slane %v529, 2
    %v531 = vadd.f32 %v529, %v530
    %v532 = vrot.slane %v531, 1
    %v533 = vadd.f32 %v531, %v532
    %v534 = vsel %vm470, %v151, 0.0
    %v535 = vrot.slane %v534, 4
    %v536 = vadd.f32 %v534, %v535
    %v537 = vrot.slane %v536, 2
    %v538 = vadd.f32 %v536, %v537
    %v539 = vrot.slane %v538, 1
    %v540 = vadd.f32 %v538, %v539
    %v541 = vsel %vm470, %v137, 0.0
    %v542 = vrot.slane %v541, 4
    %v543 = vadd.f32 %v541, %v542
    %v544 = vrot.slane %v543, 2
    %v545 = vadd.f32 %v543, %v544
    %v546 = vrot.slane %v545, 1
    %v547 = vadd.f32 %v545, %v546
    %v548 = vsel %vm470, %v153, 0.0
    %v549 = vrot.slane %v548, 4
    %v550 = vadd.f32 %v548, %v549
    %v551 = vrot.slane %v550, 2
    %v552 = vadd.f32 %v550, %v551
    %v553 = vrot.slane %v552, 1
    %v554 = vadd.f32 %v552, %v553
    %v555 = vsel %vm470, %v145, 0.0
    %v556 = vrot.slane %v555, 4
    %v557 = vadd.f32 %v555, %v556
    %v558 = vrot.slane %v557, 2
    %v559 = vadd.f32 %v557, %v558
    %v560 = vrot.slane %v559, 1
    %v561 = vadd.f32 %v559, %v560
    %v562 = vsel %vm470, %v155, 0.0
    %v563 = vrot.slane %v562, 4
    %v564 = vadd.f32 %v562, %v563
    %v565 = vrot.slane %v564, 2
    %v566 = vadd.f32 %v564, %v565
    %v567 = vrot.slane %v566, 1
    %v568 = vadd.f32 %v566, %v567
    %v569 = vsel %vm470, %v149, 0.0
    %v570 = vrot.slane %v569, 4
    %v571 = vadd.f32 %v569, %v570
    %v572 = vrot.slane %v571, 2
    %v573 = vadd.f32 %v571, %v572
    %v574 = vrot.slane %v573, 1
    %v575 = vadd.f32 %v573, %v574
    %v576 = vsel %vm470, %v157, 0.0
    %v577 = vrot.slane %v576, 4
    %v578 = vadd.f32 %v576, %v577
    %v579 = vrot.slane %v578, 2
    %v580 = vadd.f32 %v578, %v579
    %v581 = vrot.slane %v580, 1
    %v582 = vadd.f32 %v580, %v581
    %v583 = vsel %vm470, %v185, 0.0
    %v584 = vrot.slane %v583, 4
    %v585 = vadd.f32 %v583, %v584
    %v586 = vrot.slane %v585, 2
    %v587 = vadd.f32 %v585, %v586
    %v588 = vrot.slane %v587, 1
    %v589 = vadd.f32 %v587, %v588
    %v590 = vsel %vm470, %v203, 0.0
    %v591 = vrot.slane %v590, 4
    %v592 = vadd.f32 %v590, %v591
    %v593 = vrot.slane %v592, 2
    %v594 = vadd.f32 %v592, %v593
    %v595 = vrot.slane %v594, 1
    %v596 = vadd.f32 %v594, %v595
    %v597 = vsel %vm470, %v189, 0.0
    %v598 = vrot.slane %v597, 4
    %v599 = vadd.f32 %v597, %v598
    %v600 = vrot.slane %v599, 2
    %v601 = vadd.f32 %v599, %v600
    %v602 = vrot.slane %v601, 1
    %v603 = vadd.f32 %v601, %v602
    %v604 = vsel %vm470, %v205, 0.0
    %v605 = vrot.slane %v604, 4
    %v606 = vadd.f32 %v604, %v605
    %v607 = vrot.slane %v606, 2
    %v608 = vadd.f32 %v606, %v607
    %v609 = vrot.slane %v608, 1
    %v610 = vadd.f32 %v608, %v609
    %v611 = vsel %vm470, %v197, 0.0
    %v612 = vrot.slane %v611, 4
    %v613 = vadd.f32 %v611, %v612
    %v614 = vrot.slane %v613, 2
    %v615 = vadd.f32 %v613, %v614
    %v616 = vrot.slane %v615, 1
    %v617 = vadd.f32 %v615, %v616
    %v618 = vsel %vm470, %v207, 0.0
    %v619 = vrot.slane %v618, 4
    %v620 = vadd.f32 %v618, %v619
    %v621 = vrot.slane %v620, 2
    %v622 = vadd.f32 %v620, %v621
    %v623 = vrot.slane %v622, 1
    %v624 = vadd.f32 %v622, %v623
    %v625 = vsel %vm470, %v201, 0.0
    %v626 = vrot.slane %v625, 4
    %v627 = vadd.f32 %v625, %v626
    %v628 = vrot.slane %v627, 2
    %v629 = vadd.f32 %v627, %v628
    %v630 = vrot.slane %v629, 1
    %v631 = vadd.f32 %v629, %v630
    %v632 = vsel %vm470, %v209, 0.0
    %v633 = vrot.slane %v632, 4
    %v634 = vadd.f32 %v632, %v633
    %v635 = vrot.slane %v634, 2
    %v636 = vadd.f32 %v634, %v635
    %v637 = vrot.slane %v636, 1
    %v638 = vadd.f32 %v636, %v637
    %v639 = vsel %vm470, %v237, 0.0
    %v640 = vrot.slane %v639, 4
    %v641 = vadd.f32 %v639, %v640
    %v642 = vrot.slane %v641, 2
    %v643 = vadd.f32 %v641, %v642
    %v644 = vrot.slane %v643, 1
    %v645 = vadd.f32 %v643, %v644
    %v646 = vsel %vm470, %v255, 0.0
    %v647 = vrot.slane %v646, 4
    %v648 = vadd.f32 %v646, %v647
    %v649 = vrot.slane %v648, 2
    %v650 = vadd.f32 %v648, %v649
    %v651 = vrot.slane %v650, 1
    %v652 = vadd.f32 %v650, %v651
    %v653 = vsel %vm470, %v241, 0.0
    %v654 = vrot.slane %v653, 4
    %v655 = vadd.f32 %v653, %v654
    %v656 = vrot.slane %v655, 2
    %v657 = vadd.f32 %v655, %v656
    %v658 = vrot.slane %v657, 1
    %v659 = vadd.f32 %v657, %v658
    %v660 = vsel %vm470, %v257, 0.0
    %v661 = vrot.slane %v660, 4
    %v662 = vadd.f32 %v660, %v661
    %v663 = vrot.slane %v662, 2
    %v664 = vadd.f32 %v662, %v663
    %v665 = vrot.slane %v664, 1
    %v666 = vadd.f32 %v664, %v665
    %v667 = vsel %vm470, %v249, 0.0
    %v668 = vrot.slane %v667, 4
    %v669 = vadd.f32 %v667, %v668
    %v670 = vrot.slane %v669, 2
    %v671 = vadd.f32 %v669, %v670
    %v672 = vrot.slane %v671, 1
    %v673 = vadd.f32 %v671, %v672
    %v674 = vsel %vm470, %v259, 0.0
    %v675 = vrot.slane %v674, 4
    %v676 = vadd.f32 %v674, %v675
    %v677 = vrot.slane %v676, 2
    %v678 = vadd.f32 %v676, %v677
    %v679 = vrot.slane %v678, 1
    %v680 = vadd.f32 %v678, %v679
    %v681 = vsel %vm470, %v253, 0.0
    %v682 = vrot.slane %v681, 4
    %v683 = vadd.f32 %v681, %v682
    %v684 = vrot.slane %v683, 2
    %v685 = vadd.f32 %v683, %v684
    %v686 = vrot.slane %v685, 1
    %v687 = vadd.f32 %v685, %v686
    %v688 = vsel %vm470, %v261, 0.0
    %v689 = vrot.slane %v688, 4
    %v690 = vadd.f32 %v688, %v689
    %v691 = vrot.slane %v690, 2
    %v692 = vadd.f32 %v690, %v691
    %v693 = vrot.slane %v692, 1
    %v694 = vadd.f32 %v692, %v693
    %v695 = vsel %vm470, %v289, 0.0
    %v696 = vrot.slane %v695, 4
    %v697 = vadd.f32 %v695, %v696
    %v698 = vrot.slane %v697, 2
    %v699 = vadd.f32 %v697, %v698
    %v700 = vrot.slane %v699, 1
    %v701 = vadd.f32 %v699, %v700
    %v702 = vsel %vm470, %v307, 0.0
    %v703 = vrot.slane %v702, 4
    %v704 = vadd.f32 %v702, %v703
    %v705 = vrot.slane %v704, 2
    %v706 = vadd.f32 %v704, %v705
    %v707 = vrot.slane %v706, 1
    %v708 = vadd.f32 %v706, %v707
    %v709 = vsel %vm470, %v293, 0.0
    %v710 = vrot.slane %v709, 4
    %v711 = vadd.f32 %v709, %v710
    %v712 = vrot.slane %v711, 2
    %v713 = vadd.f32 %v711, %v712
    %v714 = vrot.slane %v713, 1
    %v715 = vadd.f32 %v713, %v714
    %v716 = vsel %vm470, %v309, 0.0
    %v717 = vrot.slane %v716, 4
    %v718 = vadd.f32 %v716, %v717
    %v719 = vrot.slane %v718, 2
    %v720 = vadd.f32 %v718, %v719
    %v721 = vrot.slane %v720, 1
    %v722 = vadd.f32 %v720, %v721
    %v723 = vsel %vm470, %v301, 0.0
    %v724 = vrot.slane %v723, 4
    %v725 = vadd.f32 %v723, %v724
    %v726 = vrot.slane %v725, 2
    %v727 = vadd.f32 %v725, %v726
    %v728 = vrot.slane %v727, 1
    %v729 = vadd.f32 %v727, %v728
    %v730 = vsel %vm470, %v311, 0.0
    %v731 = vrot.slane %v730, 4
    %v732 = vadd.f32 %v730, %v731
    %v733 = vrot.slane %v732, 2
    %v734 = vadd.f32 %v732, %v733
    %v735 = vrot.slane %v734, 1
    %v736 = vadd.f32 %v734, %v735
    %v737 = vsel %vm470, %v305, 0.0
    %v738 = vrot.slane %v737, 4
    %v739 = vadd.f32 %v737, %v738
    %v740 = vrot.slane %v739, 2
    %v741 = vadd.f32 %v739, %v740
    %v742 = vrot.slane %v741, 1
    %v743 = vadd.f32 %v741, %v742
    %v744 = vsel %vm470, %v313, 0.0
    %v745 = vrot.slane %v744, 4
    %v746 = vadd.f32 %v744, %v745
    %v747 = vrot.slane %v746, 2
    %v748 = vadd.f32 %v746, %v747
    %v749 = vrot.slane %v748, 1
    %v750 = vadd.f32 %v748, %v749
    %v751 = vsel %vm470, %v341, 0.0
    %v752 = vrot.slane %v751, 4
    %v753 = vadd.f32 %v751, %v752
    %v754 = vrot.slane %v753, 2
    %v755 = vadd.f32 %v753, %v754
    %v756 = vrot.slane %v755, 1
    %v757 = vadd.f32 %v755, %v756
    %v758 = vsel %vm470, %v359, 0.0
    %v759 = vrot.slane %v758, 4
    %v760 = vadd.f32 %v758, %v759
    %v761 = vrot.slane %v760, 2
    %v762 = vadd.f32 %v760, %v761
    %v763 = vrot.slane %v762, 1
    %v764 = vadd.f32 %v762, %v763
    %v765 = vsel %vm470, %v345, 0.0
    %v766 = vrot.slane %v765, 4
    %v767 = vadd.f32 %v765, %v766
    %v768 = vrot.slane %v767, 2
    %v769 = vadd.f32 %v767, %v768
    %v770 = vrot.slane %v769, 1
    %v771 = vadd.f32 %v769, %v770
    %v772 = vsel %vm470, %v361, 0.0
    %v773 = vrot.slane %v772, 4
    %v774 = vadd.f32 %v772, %v773
    %v775 = vrot.slane %v774, 2
    %v776 = vadd.f32 %v774, %v775
    %v777 = vrot.slane %v776, 1
    %v778 = vadd.f32 %v776, %v777
    %v779 = vsel %vm470, %v353, 0.0
    %v780 = vrot.slane %v779, 4
    %v781 = vadd.f32 %v779, %v780
    %v782 = vrot.slane %v781, 2
    %v783 = vadd.f32 %v781, %v782
    %v784 = vrot.slane %v783, 1
    %v785 = vadd.f32 %v783, %v784
    %v786 = vsel %vm470, %v363, 0.0
    %v787 = vrot.slane %v786, 4
    %v788 = vadd.f32 %v786, %v787
    %v789 = vrot.slane %v788, 2
    %v790 = vadd.f32 %v788, %v789
    %v791 = vrot.slane %v790, 1
    %v792 = vadd.f32 %v790, %v791
    %v793 = vsel %vm470, %v357, 0.0
    %v794 = vrot.slane %v793, 4
    %v795 = vadd.f32 %v793, %v794
    %v796 = vrot.slane %v795, 2
    %v797 = vadd.f32 %v795, %v796
    %v798 = vrot.slane %v797, 1
    %v799 = vadd.f32 %v797, %v798
    %v800 = vsel %vm470, %v365, 0.0
    %v801 = vrot.slane %v800, 4
    %v802 = vadd.f32 %v800, %v801
    %v803 = vrot.slane %v802, 2
    %v804 = vadd.f32 %v802, %v803
    %v805 = vrot.slane %v804, 1
    %v806 = vadd.f32 %v804, %v805
    %v807 = vsel %vm470, %v393, 0.0
    %v808 = vrot.slane %v807, 4
    %v809 = vadd.f32 %v807, %v808
    %v810 = vrot.slane %v809, 2
    %v811 = vadd.f32 %v809, %v810
    %v812 = vrot.slane %v811, 1
    %v813 = vadd.f32 %v811, %v812
    %v814 = vsel %vm470, %v411, 0.0
    %v815 = vrot.slane %v814, 4
    %v816 = vadd.f32 %v814, %v815
    %v817 = vrot.slane %v816, 2
    %v818 = vadd.f32 %v816, %v817
    %v819 = vrot.slane %v818, 1
    %v820 = vadd.f32 %v818, %v819
    %v821 = vsel %vm470, %v397, 0.0
    %v822 = vrot.slane %v821, 4
    %v823 = vadd.f32 %v821, %v822
    %v824 = vrot.slane %v823, 2
    %v825 = vadd.f32 %v823, %v824
    %v826 = vrot.slane %v825, 1
    %v827 = vadd.f32 %v825, %v826
    %v828 = vsel %vm470, %v413, 0.0
    %v829 = vrot.slane %v828, 4
    %v830 = vadd.f32 %v828, %v829
    %v831 = vrot.slane %v830, 2
    %v832 = vadd.f32 %v830, %v831
    %v833 = vrot.slane %v832, 1
    %v834 = vadd.f32 %v832, %v833
    %v835 = vsel %vm470, %v405, 0.0
    %v836 = vrot.slane %v835, 4
    %v837 = vadd.f32 %v835, %v836
    %v838 = vrot.slane %v837, 2
    %v839 = vadd.f32 %v837, %v838
    %v840 = vrot.slane %v839, 1
    %v841 = vadd.f32 %v839, %v840
    %v842 = vsel %vm470, %v415, 0.0
    %v843 = vrot.slane %v842, 4
    %v844 = vadd.f32 %v842, %v843
    %v845 = vrot.slane %v844, 2
    %v846 = vadd.f32 %v844, %v845
    %v847 = vrot.slane %v846, 1
    %v848 = vadd.f32 %v846, %v847
    %v849 = vsel %vm470, %v409, 0.0
    %v850 = vrot.slane %v849, 4
    %v851 = vadd.f32 %v849, %v850
    %v852 = vrot.slane %v851, 2
    %v853 = vadd.f32 %v851, %v852
    %v854 = vrot.slane %v853, 1
    %v855 = vadd.f32 %v853, %v854
    %v856 = vsel %vm470, %v417, 0.0
    %v857 = vrot.slane %v856, 4
    %v858 = vadd.f32 %v856, %v857
    %v859 = vrot.slane %v858, 2
    %v860 = vadd.f32 %v858, %v859
    %v861 = vrot.slane %v860, 1
    %v862 = vadd.f32 %v860, %v861
    %v863 = vsel %vm470, %v445, 0.0
    %v864 = vrot.slane %v863, 4
    %v865 = vadd.f32 %v863, %v864
    %v866 = vrot.slane %v865, 2
    %v867 = vadd.f32 %v865, %v866
    %v868 = vrot.slane %v867, 1
    %v869 = vadd.f32 %v867, %v868
    %v870 = vsel %vm470, %v463, 0.0
    %v871 = vrot.slane %v870, 4
    %v872 = vadd.f32 %v870, %v871
    %v873 = vrot.slane %v872, 2
    %v874 = vadd.f32 %v872, %v873
    %v875 = vrot.slane %v874, 1
    %v876 = vadd.f32 %v874, %v875
    %v877 = vsel %vm470, %v449, 0.0
    %v878 = vrot.slane %v877, 4
    %v879 = vadd.f32 %v877, %v878
    %v880 = vrot.slane %v879, 2
    %v881 = vadd.f32 %v879, %v880
    %v882 = vrot.slane %v881, 1
    %v883 = vadd.f32 %v881, %v882
    %v884 = vsel %vm470, %v465, 0.0
    %v885 = vrot.slane %v884, 4
    %v886 = vadd.f32 %v884, %v885
    %v887 = vrot.slane %v886, 2
    %v888 = vadd.f32 %v886, %v887
    %v889 = vrot.slane %v888, 1
    %v890 = vadd.f32 %v888, %v889
    %v891 = vsel %vm470, %v457, 0.0
    %v892 = vrot.slane %v891, 4
    %v893 = vadd.f32 %v891, %v892
    %v894 = vrot.slane %v893, 2
    %v895 = vadd.f32 %v893, %v894
    %v896 = vrot.slane %v895, 1
    %v897 = vadd.f32 %v895, %v896
    %v898 = vsel %vm470, %v467, 0.0
    %v899 = vrot.slane %v898, 4
    %v900 = vadd.f32 %v898, %v899
    %v901 = vrot.slane %v900, 2
    %v902 = vadd.f32 %v900, %v901
    %v903 = vrot.slane %v902, 1
    %v904 = vadd.f32 %v902, %v903
    %v905 = vsel %vm470, %v461, 0.0
    %v906 = vrot.slane %v905, 4
    %v907 = vadd.f32 %v905, %v906
    %v908 = vrot.slane %v907, 2
    %v909 = vadd.f32 %v907, %v908
    %v910 = vrot.slane %v909, 1
    %v911 = vadd.f32 %v909, %v910
    %v912 = vsel %vm470, %v469, 0.0
    %v913 = vrot.slane %v912, 4
    %v914 = vadd.f32 %v912, %v913
    %v915 = vrot.slane %v914, 2
    %v916 = vadd.f32 %v914, %v915
    %v917 = vrot.slane %v916, 1
    %v918 = vadd.f32 %v916, %v917
    %v919 = vsel %vm470, %v81, -inf
    %v920 = vrot.slane %v919, 4
    %v921 = vmax.f32 %v919, %v920
    %v922 = vrot.slane %v921, 2
    %v923 = vmax.f32 %v921, %v922
    %v924 = vrot.slane %v923, 1
    %v925 = vmax.f32 %v923, %v924
    %v926 = vsel %vm470, %v99, -inf
    %v927 = vrot.slane %v926, 4
    %v928 = vmax.f32 %v926, %v927
    %v929 = vrot.slane %v928, 2
    %v930 = vmax.f32 %v928, %v929
    %v931 = vrot.slane %v930, 1
    %v932 = vmax.f32 %v930, %v931
    %v933 = vsel %vm470, %v85, -inf
    %v934 = vrot.slane %v933, 4
    %v935 = vmax.f32 %v933, %v934
    %v936 = vrot.slane %v935, 2
    %v937 = vmax.f32 %v935, %v936
    %v938 = vrot.slane %v937, 1
    %v939 = vmax.f32 %v937, %v938
    %v940 = vsel %vm470, %v101, -inf
    %v941 = vrot.slane %v940, 4
    %v942 = vmax.f32 %v940, %v941
    %v943 = vrot.slane %v942, 2
    %v944 = vmax.f32 %v942, %v943
    %v945 = vrot.slane %v944, 1
    %v946 = vmax.f32 %v944, %v945
    %v947 = vsel %vm470, %v93, -inf
    %v948 = vrot.slane %v947, 4
    %v949 = vmax.f32 %v947, %v948
    %v950 = vrot.slane %v949, 2
    %v951 = vmax.f32 %v949, %v950
    %v952 = vrot.slane %v951, 1
    %v953 = vmax.f32 %v951, %v952
    %v954 = vsel %vm470, %v103, -inf
    %v955 = vrot.slane %v954, 4
    %v956 = vmax.f32 %v954, %v955
    %v957 = vrot.slane %v956, 2
    %v958 = vmax.f32 %v956, %v957
    %v959 = vrot.slane %v958, 1
    %v960 = vmax.f32 %v958, %v959
    %v961 = vsel %vm470, %v97, -inf
    %v962 = vrot.slane %v961, 4
    %v963 = vmax.f32 %v961, %v962
    %v964 = vrot.slane %v963, 2
    %v965 = vmax.f32 %v963, %v964
    %v966 = vrot.slane %v965, 1
    %v967 = vmax.f32 %v965, %v966
    %v968 = vsel %vm470, %v105, -inf
    %v969 = vrot.slane %v968, 4
    %v970 = vmax.f32 %v968, %v969
    %v971 = vrot.slane %v970, 2
    %v972 = vmax.f32 %v970, %v971
    %v973 = vrot.slane %v972, 1
    %v974 = vmax.f32 %v972, %v973
    %v975 = vsel %vm470, %v133, -inf
    %v976 = vrot.slane %v975, 4
    %v977 = vmax.f32 %v975, %v976
    %v978 = vrot.slane %v977, 2
    %v979 = vmax.f32 %v977, %v978
    %v980 = vrot.slane %v979, 1
    %v981 = vmax.f32 %v979, %v980
    %v982 = vsel %vm470, %v151, -inf
    %v983 = vrot.slane %v982, 4
    %v984 = vmax.f32 %v982, %v983
    %v985 = vrot.slane %v984, 2
    %v986 = vmax.f32 %v984, %v985
    %v987 = vrot.slane %v986, 1
    %v988 = vmax.f32 %v986, %v987
    %v989 = vsel %vm470, %v137, -inf
    %v990 = vrot.slane %v989, 4
    %v991 = vmax.f32 %v989, %v990
    %v992 = vrot.slane %v991, 2
    %v993 = vmax.f32 %v991, %v992
    %v994 = vrot.slane %v993, 1
    %v995 = vmax.f32 %v993, %v994
    %v996 = vsel %vm470, %v153, -inf
    %v997 = vrot.slane %v996, 4
    %v998 = vmax.f32 %v996, %v997
    %v999 = vrot.slane %v998, 2
    %v1000 = vmax.f32 %v998, %v999
    %v1001 = vrot.slane %v1000, 1
    %v1002 = vmax.f32 %v1000, %v1001
    %v1003 = vsel %vm470, %v145, -inf
    %v1004 = vrot.slane %v1003, 4
    %v1005 = vmax.f32 %v1003, %v1004
    %v1006 = vrot.slane %v1005, 2
    %v1007 = vmax.f32 %v1005, %v1006
    %v1008 = vrot.slane %v1007, 1
    %v1009 = vmax.f32 %v1007, %v1008
    %v1010 = vsel %vm470, %v155, -inf
    %v1011 = vrot.slane %v1010, 4
    %v1012 = vmax.f32 %v1010, %v1011
    %v1013 = vrot.slane %v1012, 2
    %v1014 = vmax.f32 %v1012, %v1013
    %v1015 = vrot.slane %v1014, 1
    %v1016 = vmax.f32 %v1014, %v1015
    %v1017 = vsel %vm470, %v149, -inf
    %v1018 = vrot.slane %v1017, 4
    %v1019 = vmax.f32 %v1017, %v1018
    %v1020 = vrot.slane %v1019, 2
    %v1021 = vmax.f32 %v1019, %v1020
    %v1022 = vrot.slane %v1021, 1
    %v1023 = vmax.f32 %v1021, %v1022
    %v1024 = vsel %vm470, %v157, -inf
    %v1025 = vrot.slane %v1024, 4
    %v1026 = vmax.f32 %v1024, %v1025
    %v1027 = vrot.slane %v1026, 2
    %v1028 = vmax.f32 %v1026, %v1027
    %v1029 = vrot.slane %v1028, 1
    %v1030 = vmax.f32 %v1028, %v1029
    %v1031 = vsel %vm470, %v185, -inf
    %v1032 = vrot.slane %v1031, 4
    %v1033 = vmax.f32 %v1031, %v1032
    %v1034 = vrot.slane %v1033, 2
    %v1035 = vmax.f32 %v1033, %v1034
    %v1036 = vrot.slane %v1035, 1
    %v1037 = vmax.f32 %v1035, %v1036
    %v1038 = vsel %vm470, %v203, -inf
    %v1039 = vrot.slane %v1038, 4
    %v1040 = vmax.f32 %v1038, %v1039
    %v1041 = vrot.slane %v1040, 2
    %v1042 = vmax.f32 %v1040, %v1041
    %v1043 = vrot.slane %v1042, 1
    %v1044 = vmax.f32 %v1042, %v1043
    %v1045 = vsel %vm470, %v189, -inf
    %v1046 = vrot.slane %v1045, 4
    %v1047 = vmax.f32 %v1045, %v1046
    %v1048 = vrot.slane %v1047, 2
    %v1049 = vmax.f32 %v1047, %v1048
    %v1050 = vrot.slane %v1049, 1
    %v1051 = vmax.f32 %v1049, %v1050
    %v1052 = vsel %vm470, %v205, -inf
    %v1053 = vrot.slane %v1052, 4
    %v1054 = vmax.f32 %v1052, %v1053
    %v1055 = vrot.slane %v1054, 2
    %v1056 = vmax.f32 %v1054, %v1055
    %v1057 = vrot.slane %v1056, 1
    %v1058 = vmax.f32 %v1056, %v1057
    %v1059 = vsel %vm470, %v197, -inf
    %v1060 = vrot.slane %v1059, 4
    %v1061 = vmax.f32 %v1059, %v1060
    %v1062 = vrot.slane %v1061, 2
    %v1063 = vmax.f32 %v1061, %v1062
    %v1064 = vrot.slane %v1063, 1
    %v1065 = vmax.f32 %v1063, %v1064
    %v1066 = vsel %vm470, %v207, -inf
    %v1067 = vrot.slane %v1066, 4
    %v1068 = vmax.f32 %v1066, %v1067
    %v1069 = vrot.slane %v1068, 2
    %v1070 = vmax.f32 %v1068, %v1069
    %v1071 = vrot.slane %v1070, 1
    %v1072 = vmax.f32 %v1070, %v1071
    %v1073 = vsel %vm470, %v201, -inf
    %v1074 = vrot.slane %v1073, 4
    %v1075 = vmax.f32 %v1073, %v1074
    %v1076 = vrot.slane %v1075, 2
    %v1077 = vmax.f32 %v1075, %v1076
    %v1078 = vrot.slane %v1077, 1
    %v1079 = vmax.f32 %v1077, %v1078
    %v1080 = vsel %vm470, %v209, -inf
    %v1081 = vrot.slane %v1080, 4
    %v1082 = vmax.f32 %v1080, %v1081
    %v1083 = vrot.slane %v1082, 2
    %v1084 = vmax.f32 %v1082, %v1083
    %v1085 = vrot.slane %v1084, 1
    %v1086 = vmax.f32 %v1084, %v1085
    %v1087 = vsel %vm470, %v237, -inf
    %v1088 = vrot.slane %v1087, 4
    %v1089 = vmax.f32 %v1087, %v1088
    %v1090 = vrot.slane %v1089, 2
    %v1091 = vmax.f32 %v1089, %v1090
    %v1092 = vrot.slane %v1091, 1
    %v1093 = vmax.f32 %v1091, %v1092
    %v1094 = vsel %vm470, %v255, -inf
    %v1095 = vrot.slane %v1094, 4
    %v1096 = vmax.f32 %v1094, %v1095
    %v1097 = vrot.slane %v1096, 2
    %v1098 = vmax.f32 %v1096, %v1097
    %v1099 = vrot.slane %v1098, 1
    %v1100 = vmax.f32 %v1098, %v1099
    %v1101 = vsel %vm470, %v241, -inf
    %v1102 = vrot.slane %v1101, 4
    %v1103 = vmax.f32 %v1101, %v1102
    %v1104 = vrot.slane %v1103, 2
    %v1105 = vmax.f32 %v1103, %v1104
    %v1106 = vrot.slane %v1105, 1
    %v1107 = vmax.f32 %v1105, %v1106
    %v1108 = vsel %vm470, %v257, -inf
    %v1109 = vrot.slane %v1108, 4
    %v1110 = vmax.f32 %v1108, %v1109
    %v1111 = vrot.slane %v1110, 2
    %v1112 = vmax.f32 %v1110, %v1111
    %v1113 = vrot.slane %v1112, 1
    %v1114 = vmax.f32 %v1112, %v1113
    %v1115 = vsel %vm470, %v249, -inf
    %v1116 = vrot.slane %v1115, 4
    %v1117 = vmax.f32 %v1115, %v1116
    %v1118 = vrot.slane %v1117, 2
    %v1119 = vmax.f32 %v1117, %v1118
    %v1120 = vrot.slane %v1119, 1
    %v1121 = vmax.f32 %v1119, %v1120
    %v1122 = vsel %vm470, %v259, -inf
    %v1123 = vrot.slane %v1122, 4
    %v1124 = vmax.f32 %v1122, %v1123
    %v1125 = vrot.slane %v1124, 2
    %v1126 = vmax.f32 %v1124, %v1125
    %v1127 = vrot.slane %v1126, 1
    %v1128 = vmax.f32 %v1126, %v1127
    %v1129 = vsel %vm470, %v253, -inf
    %v1130 = vrot.slane %v1129, 4
    %v1131 = vmax.f32 %v1129, %v1130
    %v1132 = vrot.slane %v1131, 2
    %v1133 = vmax.f32 %v1131, %v1132
    %v1134 = vrot.slane %v1133, 1
    %v1135 = vmax.f32 %v1133, %v1134
    %v1136 = vsel %vm470, %v261, -inf
    %v1137 = vrot.slane %v1136, 4
    %v1138 = vmax.f32 %v1136, %v1137
    %v1139 = vrot.slane %v1138, 2
    %v1140 = vmax.f32 %v1138, %v1139
    %v1141 = vrot.slane %v1140, 1
    %v1142 = vmax.f32 %v1140, %v1141
    %v1143 = vsel %vm470, %v289, -inf
    %v1144 = vrot.slane %v1143, 4
    %v1145 = vmax.f32 %v1143, %v1144
    %v1146 = vrot.slane %v1145, 2
    %v1147 = vmax.f32 %v1145, %v1146
    %v1148 = vrot.slane %v1147, 1
    %v1149 = vmax.f32 %v1147, %v1148
    %v1150 = vsel %vm470, %v307, -inf
    %v1151 = vrot.slane %v1150, 4
    %v1152 = vmax.f32 %v1150, %v1151
    %v1153 = vrot.slane %v1152, 2
    %v1154 = vmax.f32 %v1152, %v1153
    %v1155 = vrot.slane %v1154, 1
    %v1156 = vmax.f32 %v1154, %v1155
    %v1157 = vsel %vm470, %v293, -inf
    %v1158 = vrot.slane %v1157, 4
    %v1159 = vmax.f32 %v1157, %v1158
    %v1160 = vrot.slane %v1159, 2
    %v1161 = vmax.f32 %v1159, %v1160
    %v1162 = vrot.slane %v1161, 1
    %v1163 = vmax.f32 %v1161, %v1162
    %v1164 = vsel %vm470, %v309, -inf
    %v1165 = vrot.slane %v1164, 4
    %v1166 = vmax.f32 %v1164, %v1165
    %v1167 = vrot.slane %v1166, 2
    %v1168 = vmax.f32 %v1166, %v1167
    %v1169 = vrot.slane %v1168, 1
    %v1170 = vmax.f32 %v1168, %v1169
    %v1171 = vsel %vm470, %v301, -inf
    %v1172 = vrot.slane %v1171, 4
    %v1173 = vmax.f32 %v1171, %v1172
    %v1174 = vrot.slane %v1173, 2
    %v1175 = vmax.f32 %v1173, %v1174
    %v1176 = vrot.slane %v1175, 1
    %v1177 = vmax.f32 %v1175, %v1176
    %v1178 = vsel %vm470, %v311, -inf
    %v1179 = vrot.slane %v1178, 4
    %v1180 = vmax.f32 %v1178, %v1179
    %v1181 = vrot.slane %v1180, 2
    %v1182 = vmax.f32 %v1180, %v1181
    %v1183 = vrot.slane %v1182, 1
    %v1184 = vmax.f32 %v1182, %v1183
    %v1185 = vsel %vm470, %v305, -inf
    %v1186 = vrot.slane %v1185, 4
    %v1187 = vmax.f32 %v1185, %v1186
    %v1188 = vrot.slane %v1187, 2
    %v1189 = vmax.f32 %v1187, %v1188
    %v1190 = vrot.slane %v1189, 1
    %v1191 = vmax.f32 %v1189, %v1190
    %v1192 = vsel %vm470, %v313, -inf
    %v1193 = vrot.slane %v1192, 4
    %v1194 = vmax.f32 %v1192, %v1193
    %v1195 = vrot.slane %v1194, 2
    %v1196 = vmax.f32 %v1194, %v1195
    %v1197 = vrot.slane %v1196, 1
    %v1198 = vmax.f32 %v1196, %v1197
    %v1199 = vsel %vm470, %v341, -inf
    %v1200 = vrot.slane %v1199, 4
    %v1201 = vmax.f32 %v1199, %v1200
    %v1202 = vrot.slane %v1201, 2
    %v1203 = vmax.f32 %v1201, %v1202
    %v1204 = vrot.slane %v1203, 1
    %v1205 = vmax.f32 %v1203, %v1204
    %v1206 = vsel %vm470, %v359, -inf
    %v1207 = vrot.slane %v1206, 4
    %v1208 = vmax.f32 %v1206, %v1207
    %v1209 = vrot.slane %v1208, 2
    %v1210 = vmax.f32 %v1208, %v1209
    %v1211 = vrot.slane %v1210, 1
    %v1212 = vmax.f32 %v1210, %v1211
    %v1213 = vsel %vm470, %v345, -inf
    %v1214 = vrot.slane %v1213, 4
    %v1215 = vmax.f32 %v1213, %v1214
    %v1216 = vrot.slane %v1215, 2
    %v1217 = vmax.f32 %v1215, %v1216
    %v1218 = vrot.slane %v1217, 1
    %v1219 = vmax.f32 %v1217, %v1218
    %v1220 = vsel %vm470, %v361, -inf
    %v1221 = vrot.slane %v1220, 4
    %v1222 = vmax.f32 %v1220, %v1221
    %v1223 = vrot.slane %v1222, 2
    %v1224 = vmax.f32 %v1222, %v1223
    %v1225 = vrot.slane %v1224, 1
    %v1226 = vmax.f32 %v1224, %v1225
    %v1227 = vsel %vm470, %v353, -inf
    %v1228 = vrot.slane %v1227, 4
    %v1229 = vmax.f32 %v1227, %v1228
    %v1230 = vrot.slane %v1229, 2
    %v1231 = vmax.f32 %v1229, %v1230
    %v1232 = vrot.slane %v1231, 1
    %v1233 = vmax.f32 %v1231, %v1232
    %v1234 = vsel %vm470, %v363, -inf
    %v1235 = vrot.slane %v1234, 4
    %v1236 = vmax.f32 %v1234, %v1235
    %v1237 = vrot.slane %v1236, 2
    %v1238 = vmax.f32 %v1236, %v1237
    %v1239 = vrot.slane %v1238, 1
    %v1240 = vmax.f32 %v1238, %v1239
    %v1241 = vsel %vm470, %v357, -inf
    %v1242 = vrot.slane %v1241, 4
    %v1243 = vmax.f32 %v1241, %v1242
    %v1244 = vrot.slane %v1243, 2
    %v1245 = vmax.f32 %v1243, %v1244
    %v1246 = vrot.slane %v1245, 1
    %v1247 = vmax.f32 %v1245, %v1246
    %v1248 = vsel %vm470, %v365, -inf
    %v1249 = vrot.slane %v1248, 4
    %v1250 = vmax.f32 %v1248, %v1249
    %v1251 = vrot.slane %v1250, 2
    %v1252 = vmax.f32 %v1250, %v1251
    %v1253 = vrot.slane %v1252, 1
    %v1254 = vmax.f32 %v1252, %v1253
    %v1255 = vsel %vm470, %v393, -inf
    %v1256 = vrot.slane %v1255, 4
    %v1257 = vmax.f32 %v1255, %v1256
    %v1258 = vrot.slane %v1257, 2
    %v1259 = vmax.f32 %v1257, %v1258
    %v1260 = vrot.slane %v1259, 1
    %v1261 = vmax.f32 %v1259, %v1260
    %v1262 = vsel %vm470, %v411, -inf
    %v1263 = vrot.slane %v1262, 4
    %v1264 = vmax.f32 %v1262, %v1263
    %v1265 = vrot.slane %v1264, 2
    %v1266 = vmax.f32 %v1264, %v1265
    %v1267 = vrot.slane %v1266, 1
    %v1268 = vmax.f32 %v1266, %v1267
    %v1269 = vsel %vm470, %v397, -inf
    %v1270 = vrot.slane %v1269, 4
    %v1271 = vmax.f32 %v1269, %v1270
    %v1272 = vrot.slane %v1271, 2
    %v1273 = vmax.f32 %v1271, %v1272
    %v1274 = vrot.slane %v1273, 1
    %v1275 = vmax.f32 %v1273, %v1274
    %v1276 = vsel %vm470, %v413, -inf
    %v1277 = vrot.slane %v1276, 4
    %v1278 = vmax.f32 %v1276, %v1277
    %v1279 = vrot.slane %v1278, 2
    %v1280 = vmax.f32 %v1278, %v1279
    %v1281 = vrot.slane %v1280, 1
    %v1282 = vmax.f32 %v1280, %v1281
    %v1283 = vsel %vm470, %v405, -inf
    %v1284 = vrot.slane %v1283, 4
    %v1285 = vmax.f32 %v1283, %v1284
    %v1286 = vrot.slane %v1285, 2
    %v1287 = vmax.f32 %v1285, %v1286
    %v1288 = vrot.slane %v1287, 1
    %v1289 = vmax.f32 %v1287, %v1288
    %v1290 = vsel %vm470, %v415, -inf
    %v1291 = vrot.slane %v1290, 4
    %v1292 = vmax.f32 %v1290, %v1291
    %v1293 = vrot.slane %v1292, 2
    %v1294 = vmax.f32 %v1292, %v1293
    %v1295 = vrot.slane %v1294, 1
    %v1296 = vmax.f32 %v1294, %v1295
    %v1297 = vsel %vm470, %v409, -inf
    %v1298 = vrot.slane %v1297, 4
    %v1299 = vmax.f32 %v1297, %v1298
    %v1300 = vrot.slane %v1299, 2
    %v1301 = vmax.f32 %v1299, %v1300
    %v1302 = vrot.slane %v1301, 1
    %v1303 = vmax.f32 %v1301, %v1302
    %v1304 = vsel %vm470, %v417, -inf
    %v1305 = vrot.slane %v1304, 4
    %v1306 = vmax.f32 %v1304, %v1305
    %v1307 = vrot.slane %v1306, 2
    %v1308 = vmax.f32 %v1306, %v1307
    %v1309 = vrot.slane %v1308, 1
    %v1310 = vmax.f32 %v1308, %v1309
    %v1311 = vsel %vm470, %v445, -inf
    %v1312 = vrot.slane %v1311, 4
    %v1313 = vmax.f32 %v1311, %v1312
    %v1314 = vrot.slane %v1313, 2
    %v1315 = vmax.f32 %v1313, %v1314
    %v1316 = vrot.slane %v1315, 1
    %v1317 = vmax.f32 %v1315, %v1316
    %v1318 = vsel %vm470, %v463, -inf
    %v1319 = vrot.slane %v1318, 4
    %v1320 = vmax.f32 %v1318, %v1319
    %v1321 = vrot.slane %v1320, 2
    %v1322 = vmax.f32 %v1320, %v1321
    %v1323 = vrot.slane %v1322, 1
    %v1324 = vmax.f32 %v1322, %v1323
    %v1325 = vsel %vm470, %v449, -inf
    %v1326 = vrot.slane %v1325, 4
    %v1327 = vmax.f32 %v1325, %v1326
    %v1328 = vrot.slane %v1327, 2
    %v1329 = vmax.f32 %v1327, %v1328
    %v1330 = vrot.slane %v1329, 1
    %v1331 = vmax.f32 %v1329, %v1330
    %v1332 = vsel %vm470, %v465, -inf
    %v1333 = vrot.slane %v1332, 4
    %v1334 = vmax.f32 %v1332, %v1333
    %v1335 = vrot.slane %v1334, 2
    %v1336 = vmax.f32 %v1334, %v1335
    %v1337 = vrot.slane %v1336, 1
    %v1338 = vmax.f32 %v1336, %v1337
    %v1339 = vsel %vm470, %v457, -inf
    %v1340 = vrot.slane %v1339, 4
    %v1341 = vmax.f32 %v1339, %v1340
    %v1342 = vrot.slane %v1341, 2
    %v1343 = vmax.f32 %v1341, %v1342
    %v1344 = vrot.slane %v1343, 1
    %v1345 = vmax.f32 %v1343, %v1344
    %v1346 = vsel %vm470, %v467, -inf
    %v1347 = vrot.slane %v1346, 4
    %v1348 = vmax.f32 %v1346, %v1347
    %v1349 = vrot.slane %v1348, 2
    %v1350 = vmax.f32 %v1348, %v1349
    %v1351 = vrot.slane %v1350, 1
    %v1352 = vmax.f32 %v1350, %v1351
    %v1353 = vsel %vm470, %v461, -inf
    %v1354 = vrot.slane %v1353, 4
    %v1355 = vmax.f32 %v1353, %v1354
    %v1356 = vrot.slane %v1355, 2
    %v1357 = vmax.f32 %v1355, %v1356
    %v1358 = vrot.slane %v1357, 1
    %v1359 = vmax.f32 %v1357, %v1358
    %v1360 = vsel %vm470, %v469, -inf
    %v1361 = vrot.slane %v1360, 4
    %v1362 = vmax.f32 %v1360, %v1361
    %v1363 = vrot.slane %v1362, 2
    %v1364 = vmax.f32 %v1362, %v1363
    %v1365 = vrot.slane %v1364, 1
    %v1366 = vmax.f32 %v1364, %v1365
    %p1367 = scmp.eq.s32.totalorder 0, 0
    // Predicated region
    $region26: #{tpu_custom_call.1} parent=1 // pred_check
      %p1368 = pneg %p1367
    $region27: #{tpu_custom_call.1} parent=1 // pred_check_branch
      %1370 = sbr.rel (%p1368) target = $region29
    $region28: #{tpu_custom_call.1} parent=1 // pred_region
      %vm1435 = vcmask 1041409
      %v1436 = vsel %vm1435, %v484, %v477
      %vm1437 = vcmask 1042434
      %v1438 = vsel %vm1437, %v491, %v1436
      %vm1439 = vcmask 1043459
      %v1440 = vsel %vm1439, %v498, %v1438
      %vm1441 = vcmask 1044484
      %v1442 = vsel %vm1441, %v505, %v1440
      %vm1443 = vcmask 1045509
      %v1444 = vsel %vm1443, %v512, %v1442
      %vm1445 = vcmask 1046534
      %v1446 = vsel %vm1445, %v519, %v1444
      %vm1447 = vcmask 1047559
      %v1448 = vsel %vm1447, %v526, %v1446
      %v1449 = vsel %vm1435, %v540, %v533
      %v1450 = vsel %vm1437, %v547, %v1449
      %v1451 = vsel %vm1439, %v554, %v1450
      %v1452 = vsel %vm1441, %v561, %v1451
      %v1453 = vsel %vm1443, %v568, %v1452
      %v1454 = vsel %vm1445, %v575, %v1453
      %v1455 = vsel %vm1447, %v582, %v1454
      %v1456 = vsel %vm1435, %v596, %v589
      %v1457 = vsel %vm1437, %v603, %v1456
      %v1458 = vsel %vm1439, %v610, %v1457
      %v1459 = vsel %vm1441, %v617, %v1458
      %v1460 = vsel %vm1443, %v624, %v1459
      %v1461 = vsel %vm1445, %v631, %v1460
      %v1462 = vsel %vm1447, %v638, %v1461
      %v1463 = vsel %vm1435, %v652, %v645
      %v1464 = vsel %vm1437, %v659, %v1463
      %v1465 = vsel %vm1439, %v666, %v1464
      %v1466 = vsel %vm1441, %v673, %v1465
      %v1467 = vsel %vm1443, %v680, %v1466
      %v1468 = vsel %vm1445, %v687, %v1467
      %v1469 = vsel %vm1447, %v694, %v1468
      %v1470 = vsel %vm1435, %v708, %v701
      %v1471 = vsel %vm1437, %v715, %v1470
      %v1472 = vsel %vm1439, %v722, %v1471
      %v1473 = vsel %vm1441, %v729, %v1472
      %v1474 = vsel %vm1443, %v736, %v1473
      %v1475 = vsel %vm1445, %v743, %v1474
      %v1476 = vsel %vm1447, %v750, %v1475
      %v1477 = vsel %vm1435, %v764, %v757
      %v1478 = vsel %vm1437, %v771, %v1477
      %v1479 = vsel %vm1439, %v778, %v1478
      %v1480 = vsel %vm1441, %v785, %v1479
      %v1481 = vsel %vm1443, %v792, %v1480
      %v1482 = vsel %vm1445, %v799, %v1481
      %v1483 = vsel %vm1447, %v806, %v1482
      %v1484 = vsel %vm1435, %v820, %v813
      %v1485 = vsel %vm1437, %v827, %v1484
      %v1486 = vsel %vm1439, %v834, %v1485
      %v1487 = vsel %vm1441, %v841, %v1486
      %v1488 = vsel %vm1443, %v848, %v1487
      %v1489 = vsel %vm1445, %v855, %v1488
      %v1490 = vsel %vm1447, %v862, %v1489
      %v1491 = vsel %vm1435, %v876, %v869
      %v1492 = vsel %vm1437, %v883, %v1491
      %v1493 = vsel %vm1439, %v890, %v1492
      %v1494 = vsel %vm1441, %v897, %v1493
      %v1495 = vsel %vm1443, %v904, %v1494
      %v1496 = vsel %vm1445, %v911, %v1495
      %v1497 = vsel %vm1447, %v918, %v1496
      %1506 = vst [vmem:[#allocation2] sm:$0xff] %v1448
      %1507 = vst [vmem:[#allocation2 + $0x8] sm:$0xff] %v1455
      %1508 = vst [vmem:[#allocation2 + $0x10] sm:$0xff] %v1462
      %1509 = vst [vmem:[#allocation2 + $0x18] sm:$0xff] %v1469
      %1510 = vst [vmem:[#allocation2 + $0x20] sm:$0xff] %v1476
      %1511 = vst [vmem:[#allocation2 + $0x28] sm:$0xff] %v1483
      %1512 = vst [vmem:[#allocation2 + $0x30] sm:$0xff] %v1490
      %1513 = vst [vmem:[#allocation2 + $0x38] sm:$0xff] %v1497
      %v1578 = vsel %vm1435, %v932, %v925
      %v1579 = vsel %vm1437, %v939, %v1578
      %v1580 = vsel %vm1439, %v946, %v1579
      %v1581 = vsel %vm1441, %v953, %v1580
      %v1582 = vsel %vm1443, %v960, %v1581
      %v1583 = vsel %vm1445, %v967, %v1582
      %v1584 = vsel %vm1447, %v974, %v1583
      %v1585 = vsel %vm1435, %v988, %v981
      %v1586 = vsel %vm1437, %v995, %v1585
      %v1587 = vsel %vm1439, %v1002, %v1586
      %v1588 = vsel %vm1441, %v1009, %v1587
      %v1589 = vsel %vm1443, %v1016, %v1588
      %v1590 = vsel %vm1445, %v1023, %v1589
      %v1591 = vsel %vm1447, %v1030, %v1590
      %v1592 = vsel %vm1435, %v1044, %v1037
      %v1593 = vsel %vm1437, %v1051, %v1592
      %v1594 = vsel %vm1439, %v1058, %v1593
      %v1595 = vsel %vm1441, %v1065, %v1594
      %v1596 = vsel %vm1443, %v1072, %v1595
      %v1597 = vsel %vm1445, %v1079, %v1596
      %v1598 = vsel %vm1447, %v1086, %v1597
      %v1599 = vsel %vm1435, %v1100, %v1093
      %v1600 = vsel %vm1437, %v1107, %v1599
      %v1601 = vsel %vm1439, %v1114, %v1600
      %v1602 = vsel %vm1441, %v1121, %v1601
      %v1603 = vsel %vm1443, %v1128, %v1602
      %v1604 = vsel %vm1445, %v1135, %v1603
      %v1605 = vsel %vm1447, %v1142, %v1604
      %v1606 = vsel %vm1435, %v1156, %v1149
      %v1607 = vsel %vm1437, %v1163, %v1606
      %v1608 = vsel %vm1439, %v1170, %v1607
      %v1609 = vsel %vm1441, %v1177, %v1608
      %v1610 = vsel %vm1443, %v1184, %v1609
      %v1611 = vsel %vm1445, %v1191, %v1610
      %v1612 = vsel %vm1447, %v1198, %v1611
      %v1613 = vsel %vm1435, %v1212, %v1205
      %v1614 = vsel %vm1437, %v1219, %v1613
      %v1615 = vsel %vm1439, %v1226, %v1614
      %v1616 = vsel %vm1441, %v1233, %v1615
      %v1617 = vsel %vm1443, %v1240, %v1616
      %v1618 = vsel %vm1445, %v1247, %v1617
      %v1619 = vsel %vm1447, %v1254, %v1618
      %v1620 = vsel %vm1435, %v1268, %v1261
      %v1621 = vsel %vm1437, %v1275, %v1620
      %v1622 = vsel %vm1439, %v1282, %v1621
      %v1623 = vsel %vm1441, %v1289, %v1622
      %v1624 = vsel %vm1443, %v1296, %v1623
      %v1625 = vsel %vm1445, %v1303, %v1624
      %v1626 = vsel %vm1447, %v1310, %v1625
      %v1627 = vsel %vm1435, %v1324, %v1317
      %v1628 = vsel %vm1437, %v1331, %v1627
      %v1629 = vsel %vm1439, %v1338, %v1628
      %v1630 = vsel %vm1441, %v1345, %v1629
      %v1631 = vsel %vm1443, %v1352, %v1630
      %v1632 = vsel %vm1445, %v1359, %v1631
      %v1633 = vsel %vm1447, %v1366, %v1632
      %1642 = vst [vmem:[#allocation3] sm:$0xff] %v1584
      %1643 = vst [vmem:[#allocation3 + $0x8] sm:$0xff] %v1591
      %1644 = vst [vmem:[#allocation3 + $0x10] sm:$0xff] %v1598
      %1645 = vst [vmem:[#allocation3 + $0x18] sm:$0xff] %v1605
      %1646 = vst [vmem:[#allocation3 + $0x20] sm:$0xff] %v1612
      %1647 = vst [vmem:[#allocation3 + $0x28] sm:$0xff] %v1619
      %1648 = vst [vmem:[#allocation3 + $0x30] sm:$0xff] %v1626
      %1649 = vst [vmem:[#allocation3 + $0x38] sm:$0xff] %v1633
    $region29: #{tpu_custom_call.1} parent=1 // pred_fallthru
      _
    %p1650 = scmp.gt.s32.totalorder 0, 0
    // Predicated region
    $region30: #{tpu_custom_call.1} parent=1 // pred_check
      %p1651 = pneg %p1650
    $region31: #{tpu_custom_call.1} parent=1 // pred_check_branch
      %1653 = sbr.rel (%p1651) target = $region33
    $region32: #{tpu_custom_call.1} parent=1 // pred_region
      %v1654 = vld [vmem:[#allocation2] sm:$0xff]
      %v1655 = vld [vmem:[#allocation2 + $0x8] sm:$0xff]
      %v1656 = vld [vmem:[#allocation2 + $0x10] sm:$0xff]
      %v1657 = vld [vmem:[#allocation2 + $0x18] sm:$0xff]
      %v1658 = vld [vmem:[#allocation2 + $0x20] sm:$0xff]
      %v1659 = vld [vmem:[#allocation2 + $0x28] sm:$0xff]
      %v1660 = vld [vmem:[#allocation2 + $0x30] sm:$0xff]
      %v1661 = vld [vmem:[#allocation2 + $0x38] sm:$0xff]
      %vm1726 = vcmask 1041409
      %v1727 = vsel %vm1726, %v484, %v477
      %vm1728 = vcmask 1042434
      %v1729 = vsel %vm1728, %v491, %v1727
      %vm1730 = vcmask 1043459
      %v1731 = vsel %vm1730, %v498, %v1729
      %vm1732 = vcmask 1044484
      %v1733 = vsel %vm1732, %v505, %v1731
      %vm1734 = vcmask 1045509
      %v1735 = vsel %vm1734, %v512, %v1733
      %vm1736 = vcmask 1046534
      %v1737 = vsel %vm1736, %v519, %v1735
      %vm1738 = vcmask 1047559
      %v1739 = vsel %vm1738, %v526, %v1737
      %v1740 = vsel %vm1726, %v540, %v533
      %v1741 = vsel %vm1728, %v547, %v1740
      %v1742 = vsel %vm1730, %v554, %v1741
      %v1743 = vsel %vm1732, %v561, %v1742
      %v1744 = vsel %vm1734, %v568, %v1743
      %v1745 = vsel %vm1736, %v575, %v1744
      %v1746 = vsel %vm1738, %v582, %v1745
      %v1747 = vsel %vm1726, %v596, %v589
      %v1748 = vsel %vm1728, %v603, %v1747
      %v1749 = vsel %vm1730, %v610, %v1748
      %v1750 = vsel %vm1732, %v617, %v1749
      %v1751 = vsel %vm1734, %v624, %v1750
      %v1752 = vsel %vm1736, %v631, %v1751
      %v1753 = vsel %vm1738, %v638, %v1752
      %v1754 = vsel %vm1726, %v652, %v645
      %v1755 = vsel %vm1728, %v659, %v1754
      %v1756 = vsel %vm1730, %v666, %v1755
      %v1757 = vsel %vm1732, %v673, %v1756
      %v1758 = vsel %vm1734, %v680, %v1757
      %v1759 = vsel %vm1736, %v687, %v1758
      %v1760 = vsel %vm1738, %v694, %v1759
      %v1761 = vsel %vm1726, %v708, %v701
      %v1762 = vsel %vm1728, %v715, %v1761
      %v1763 = vsel %vm1730, %v722, %v1762
      %v1764 = vsel %vm1732, %v729, %v1763
      %v1765 = vsel %vm1734, %v736, %v1764
      %v1766 = vsel %vm1736, %v743, %v1765
      %v1767 = vsel %vm1738, %v750, %v1766
      %v1768 = vsel %vm1726, %v764, %v757
      %v1769 = vsel %vm1728, %v771, %v1768
      %v1770 = vsel %vm1730, %v778, %v1769
      %v1771 = vsel %vm1732, %v785, %v1770
      %v1772 = vsel %vm1734, %v792, %v1771
      %v1773 = vsel %vm1736, %v799, %v1772
      %v1774 = vsel %vm1738, %v806, %v1773
      %v1775 = vsel %vm1726, %v820, %v813
      %v1776 = vsel %vm1728, %v827, %v1775
      %v1777 = vsel %vm1730, %v834, %v1776
      %v1778 = vsel %vm1732, %v841, %v1777
      %v1779 = vsel %vm1734, %v848, %v1778
      %v1780 = vsel %vm1736, %v855, %v1779
      %v1781 = vsel %vm1738, %v862, %v1780
      %v1782 = vsel %vm1726, %v876, %v869
      %v1783 = vsel %vm1728, %v883, %v1782
      %v1784 = vsel %vm1730, %v890, %v1783
      %v1785 = vsel %vm1732, %v897, %v1784
      %v1786 = vsel %vm1734, %v904, %v1785
      %v1787 = vsel %vm1736, %v911, %v1786
      %v1788 = vsel %vm1738, %v918, %v1787
      %v1797 = vadd.f32 %v1654, %v1739
      %v1798 = vadd.f32 %v1655, %v1746
      %v1799 = vadd.f32 %v1656, %v1753
      %v1800 = vadd.f32 %v1657, %v1760
      %v1801 = vadd.f32 %v1658, %v1767
      %v1802 = vadd.f32 %v1659, %v1774
      %v1803 = vadd.f32 %v1660, %v1781
      %v1804 = vadd.f32 %v1661, %v1788
      %1805 = vst [vmem:[#allocation2] sm:$0xff] %v1797
      %1806 = vst [vmem:[#allocation2 + $0x8] sm:$0xff] %v1798
      %1807 = vst [vmem:[#allocation2 + $0x10] sm:$0xff] %v1799
      %1808 = vst [vmem:[#allocation2 + $0x18] sm:$0xff] %v1800
      %1809 = vst [vmem:[#allocation2 + $0x20] sm:$0xff] %v1801
      %1810 = vst [vmem:[#allocation2 + $0x28] sm:$0xff] %v1802
      %1811 = vst [vmem:[#allocation2 + $0x30] sm:$0xff] %v1803
      %1812 = vst [vmem:[#allocation2 + $0x38] sm:$0xff] %v1804
      %v1813 = vld [vmem:[#allocation3] sm:$0xff]
      %v1814 = vld [vmem:[#allocation3 + $0x8] sm:$0xff]
      %v1815 = vld [vmem:[#allocation3 + $0x10] sm:$0xff]
      %v1816 = vld [vmem:[#allocation3 + $0x18] sm:$0xff]
      %v1817 = vld [vmem:[#allocation3 + $0x20] sm:$0xff]
      %v1818 = vld [vmem:[#allocation3 + $0x28] sm:$0xff]
      %v1819 = vld [vmem:[#allocation3 + $0x30] sm:$0xff]
      %v1820 = vld [vmem:[#allocation3 + $0x38] sm:$0xff]
      %v1885 = vsel %vm1726, %v932, %v925
      %v1886 = vsel %vm1728, %v939, %v1885
      %v1887 = vsel %vm1730, %v946, %v1886
      %v1888 = vsel %vm1732, %v953, %v1887
      %v1889 = vsel %vm1734, %v960, %v1888
      %v1890 = vsel %vm1736, %v967, %v1889
      %v1891 = vsel %vm1738, %v974, %v1890
      %v1892 = vsel %vm1726, %v988, %v981
      %v1893 = vsel %vm1728, %v995, %v1892
      %v1894 = vsel %vm1730, %v1002, %v1893
      %v1895 = vsel %vm1732, %v1009, %v1894
      %v1896 = vsel %vm1734, %v1016, %v1895
      %v1897 = vsel %vm1736, %v1023, %v1896
      %v1898 = vsel %vm1738, %v1030, %v1897
      %v1899 = vsel %vm1726, %v1044, %v1037
      %v1900 = vsel %vm1728, %v1051, %v1899
      %v1901 = vsel %vm1730, %v1058, %v1900
      %v1902 = vsel %vm1732, %v1065, %v1901
      %v1903 = vsel %vm1734, %v1072, %v1902
      %v1904 = vsel %vm1736, %v1079, %v1903
      %v1905 = vsel %vm1738, %v1086, %v1904
      %v1906 = vsel %vm1726, %v1100, %v1093
      %v1907 = vsel %vm1728, %v1107, %v1906
      %v1908 = vsel %vm1730, %v1114, %v1907
      %v1909 = vsel %vm1732, %v1121, %v1908
      %v1910 = vsel %vm1734, %v1128, %v1909
      %v1911 = vsel %vm1736, %v1135, %v1910
      %v1912 = vsel %vm1738, %v1142, %v1911
      %v1913 = vsel %vm1726, %v1156, %v1149
      %v1914 = vsel %vm1728, %v1163, %v1913
      %v1915 = vsel %vm1730, %v1170, %v1914
      %v1916 = vsel %vm1732, %v1177, %v1915
      %v1917 = vsel %vm1734, %v1184, %v1916
      %v1918 = vsel %vm1736, %v1191, %v1917
      %v1919 = vsel %vm1738, %v1198, %v1918
      %v1920 = vsel %vm1726, %v1212, %v1205
      %v1921 = vsel %vm1728, %v1219, %v1920
      %v1922 = vsel %vm1730, %v1226, %v1921
      %v1923 = vsel %vm1732, %v1233, %v1922
      %v1924 = vsel %vm1734, %v1240, %v1923
      %v1925 = vsel %vm1736, %v1247, %v1924
      %v1926 = vsel %vm1738, %v1254, %v1925
      %v1927 = vsel %vm1726, %v1268, %v1261
      %v1928 = vsel %vm1728, %v1275, %v1927
      %v1929 = vsel %vm1730, %v1282, %v1928
      %v1930 = vsel %vm1732, %v1289, %v1929
      %v1931 = vsel %vm1734, %v1296, %v1930
      %v1932 = vsel %vm1736, %v1303, %v1931
      %v1933 = vsel %vm1738, %v1310, %v1932
      %v1934 = vsel %vm1726, %v1324, %v1317
      %v1935 = vsel %vm1728, %v1331, %v1934
      %v1936 = vsel %vm1730, %v1338, %v1935
      %v1937 = vsel %vm1732, %v1345, %v1936
      %v1938 = vsel %vm1734, %v1352, %v1937
      %v1939 = vsel %vm1736, %v1359, %v1938
      %v1940 = vsel %vm1738, %v1366, %v1939
      %v1949 = vmax.f32 %v1813, %v1891
      %v1950 = vmax.f32 %v1814, %v1898
      %v1951 = vmax.f32 %v1815, %v1905
      %v1952 = vmax.f32 %v1816, %v1912
      %v1953 = vmax.f32 %v1817, %v1919
      %v1954 = vmax.f32 %v1818, %v1926
      %v1955 = vmax.f32 %v1819, %v1933
      %v1956 = vmax.f32 %v1820, %v1940
      %1957 = vst [vmem:[#allocation3] sm:$0xff] %v1949
      %1958 = vst [vmem:[#allocation3 + $0x8] sm:$0xff] %v1950
      %1959 = vst [vmem:[#allocation3 + $0x10] sm:$0xff] %v1951
      %1960 = vst [vmem:[#allocation3 + $0x18] sm:$0xff] %v1952
      %1961 = vst [vmem:[#allocation3 + $0x20] sm:$0xff] %v1953
      %1962 = vst [vmem:[#allocation3 + $0x28] sm:$0xff] %v1954
      %1963 = vst [vmem:[#allocation3 + $0x30] sm:$0xff] %v1955
      %1964 = vst [vmem:[#allocation3 + $0x38] sm:$0xff] %v1956
    $region33: #{tpu_custom_call.1} parent=1 // pred_fallthru
      _
    // Predicated region
    $region34: #{tpu_custom_call.1} parent=1 // pred_check
      %p1965 = pneg %p1367
    $region35: #{tpu_custom_call.1} parent=1 // pred_check_branch
      %1967 = sbr.rel (%p1965) target = $region37
    $region36: #{tpu_custom_call.1} parent=1 // pred_region
      %v1968 = vld [vmem:[#allocation2] sm:$0xff]
      %v1969 = vld [vmem:[#allocation2 + $0x8] sm:$0xff]
      %v1970 = vld [vmem:[#allocation2 + $0x10] sm:$0xff]
      %v1971 = vld [vmem:[#allocation2 + $0x18] sm:$0xff]
      %v1972 = vld [vmem:[#allocation2 + $0x20] sm:$0xff]
      %v1973 = vld [vmem:[#allocation2 + $0x28] sm:$0xff]
      %v1974 = vld [vmem:[#allocation2 + $0x30] sm:$0xff]
      %v1975 = vld [vmem:[#allocation2 + $0x38] sm:$0xff]
      %1976 = vadd.xlane.f32.xlu0 %v1968
      %v1977 = vpop.xlane.xlu0 %1976
      %1978 = vadd.xlane.f32.xlu0 %v1969
      %v1979 = vpop.xlane.xlu0 %1978
      %1980 = vadd.xlane.f32.xlu0 %v1970
      %v1981 = vpop.xlane.xlu0 %1980
      %1982 = vadd.xlane.f32.xlu0 %v1971
      %v1983 = vpop.xlane.xlu0 %1982
      %1984 = vadd.xlane.f32.xlu0 %v1972
      %v1985 = vpop.xlane.xlu0 %1984
      %1986 = vadd.xlane.f32.xlu0 %v1973
      %v1987 = vpop.xlane.xlu0 %1986
      %1988 = vadd.xlane.f32.xlu0 %v1974
      %v1989 = vpop.xlane.xlu0 %1988
      %1990 = vadd.xlane.f32.xlu0 %v1975
      %v1991 = vpop.xlane.xlu0 %1990
      %v1992 = vmul.f32 %v1977, 0.00390625
      %v1993 = vmul.f32 %v1979, 0.00390625
      %v1994 = vmul.f32 %v1981, 0.00390625
      %v1995 = vmul.f32 %v1983, 0.00390625
      %v1996 = vmul.f32 %v1985, 0.00390625
      %v1997 = vmul.f32 %v1987, 0.00390625
      %v1998 = vmul.f32 %v1989, 0.00390625
      %v1999 = vmul.f32 %v1991, 0.00390625
      %v2000 = vld [vmem:[#allocation3] sm:$0xff]
      %v2001 = vld [vmem:[#allocation3 + $0x8] sm:$0xff]
      %v2002 = vld [vmem:[#allocation3 + $0x10] sm:$0xff]
      %v2003 = vld [vmem:[#allocation3 + $0x18] sm:$0xff]
      %v2004 = vld [vmem:[#allocation3 + $0x20] sm:$0xff]
      %v2005 = vld [vmem:[#allocation3 + $0x28] sm:$0xff]
      %v2006 = vld [vmem:[#allocation3 + $0x30] sm:$0xff]
      %v2007 = vld [vmem:[#allocation3 + $0x38] sm:$0xff]
      %2008 = vmax.xlane.f32.xlu0 %v2000
      %v2009 = vpop.xlane.xlu0 %2008
      %2010 = vmax.xlane.f32.xlu0 %v2001
      %v2011 = vpop.xlane.xlu0 %2010
      %2012 = vmax.xlane.f32.xlu0 %v2002
      %v2013 = vpop.xlane.xlu0 %2012
      %2014 = vmax.xlane.f32.xlu0 %v2003
      %v2015 = vpop.xlane.xlu0 %2014
      %2016 = vmax.xlane.f32.xlu0 %v2004
      %v2017 = vpop.xlane.xlu0 %2016
      %2018 = vmax.xlane.f32.xlu0 %v2005
      %v2019 = vpop.xlane.xlu0 %2018
      %2020 = vmax.xlane.f32.xlu0 %v2006
      %v2021 = vpop.xlane.xlu0 %2020
      %2022 = vmax.xlane.f32.xlu0 %v2007
      %v2023 = vpop.xlane.xlu0 %2022
      %v2032 = vlaneseq
      %v2033 = vand.u32 %v2032, 127
      %v2034 = vperm.slane %v1992, %v2033
      %v2035 = vadd.s32 %v2033, 4294967288
      %v2036 = vperm.slane %v1993, %v2035
      %vm2037 = vcmask 130112
      %v2038 = vsel %vm2037, %v2036, %v2034
      %v2039 = vadd.s32 %v2033, 4294967280
      %v2040 = vperm.slane %v1994, %v2039
      %vm2041 = vcmask 195712
      %v2042 = vsel %vm2041, %v2040, %v2038
      %v2043 = vadd.s32 %v2033, 4294967272
      %v2044 = vperm.slane %v1995, %v2043
      %vm2045 = vcmask 261312
      %v2046 = vsel %vm2045, %v2044, %v2042
      %v2047 = vperm.slane %v1996, %v2033
      %v2048 = vperm.slane %v1997, %v2035
      %v2049 = vsel %vm2037, %v2048, %v2047
      %v2050 = vperm.slane %v1998, %v2039
      %v2051 = vsel %vm2041, %v2050, %v2049
      %v2052 = vperm.slane %v1999, %v2043
      %v2053 = vsel %vm2045, %v2052, %v2051
      %vm2054 = vcmask 1041409
      %v2055 = vsel %vm2054, %v2053, %v2046
      %v2065 = vperm.slane %v2009, %v2033
      %v2066 = vperm.slane %v2011, %v2035
      %v2067 = vsel %vm2037, %v2066, %v2065
      %v2068 = vperm.slane %v2013, %v2039
      %v2069 = vsel %vm2041, %v2068, %v2067
      %v2070 = vperm.slane %v2015, %v2043
      %v2071 = vsel %vm2045, %v2070, %v2069
      %v2072 = vperm.slane %v2017, %v2033
      %v2073 = vperm.slane %v2019, %v2035
      %v2074 = vsel %vm2037, %v2073, %v2072
      %v2075 = vperm.slane %v2021, %v2039
      %v2076 = vsel %vm2041, %v2075, %v2074
      %v2077 = vperm.slane %v2023, %v2043
      %v2078 = vsel %vm2045, %v2077, %v2076
      %vm2079 = vcmask 1043459
      %v2080 = vsel %vm2079, %v2078, %v2071
      %v2082 = vsel %vm470, %v2055, %v2080
      %v2083 = vld [vmem:[%s1] sm:$0xff]
      %v2084 = vld [vmem:[%s1 + $0x8] sm:$0xff]
      %v2085 = vld [vmem:[%s1 + $0x10] sm:$0xff]
      %v2086 = vld [vmem:[%s1 + $0x18] sm:$0xff]
      %v2087 = vld [vmem:[%s2] sm:$0x1]
      %v2089 = vperm.slane %v2087, 0
      %vm2091 = vcmask 261120
      %v2093 = vsel %vm2091, %v2082, 0
      %2095 = vmatpush.msra.mxu0 0.0
      %2096 = vmatpush.msra.mxu0 0.0
      %2097 = vmatpush.msra.mxu0 0.0
      %2098 = vmatpush.msra.mxu0 0.0
      %2099 = vmatpush.msra.mxu0 0.0
      %2100 = vmatpush.msra.mxu0 0.0
      %2101 = vmatpush.msra.mxu0 0.0
      %2102 = vmatpush.msra.mxu0 0.0
      %2103 = vmatpush.msra.mxu0 0.0
      %2104 = vmatpush.msra.mxu0 0.0
      %2105 = vmatpush.msra.mxu0 0.0
      %2106 = vmatpush.msra.mxu0 0.0
      %2107 = vmatpush.msra.mxu0 %v2086
      %2108 = vmatpush.msra.mxu0 %v2085
      %2109 = vmatpush.msra.mxu0 %v2084
      %2110 = vmatpush.msra.mxu0 %v2083
      %2111 = vmatmul.f32.gmra.mxu0 %v2093
      %v2112 = vpop.f32.mrf.mxu0
      %v2113 = vadd.f32 %v2089, %v2112
      %2114 = vdwg.mxu0
      %vm2115 = vcmp.gt.f32.partialorder %v2113, 0.0
      %v2116 = vmul.f32 %v2113, 0.01
      %v2117 = vsel %vm2115, %v2113, %v2116
      %v2118 = vld [vmem:[%s3] sm:$0xff]
      %v2119 = vld [vmem:[%s4] sm:$0x1]
      %v2121 = vperm.slane %v2119, 0
      %vm2123 = vcmask 64512
      %v2125 = vsel %vm2123, %v2117, 0
      %2127 = vmatpush.msra.mxu0 0.0
      %2128 = vmatpush.msra.mxu0 0.0
      %2129 = vmatpush.msra.mxu0 0.0
      %2130 = vmatpush.msra.mxu0 0.0
      %2131 = vmatpush.msra.mxu0 0.0
      %2132 = vmatpush.msra.mxu0 0.0
      %2133 = vmatpush.msra.mxu0 0.0
      %2134 = vmatpush.msra.mxu0 0.0
      %2135 = vmatpush.msra.mxu0 0.0
      %2136 = vmatpush.msra.mxu0 0.0
      %2137 = vmatpush.msra.mxu0 0.0
      %2138 = vmatpush.msra.mxu0 0.0
      %2139 = vmatpush.msra.mxu0 0.0
      %2140 = vmatpush.msra.mxu0 0.0
      %2141 = vmatpush.msra.mxu0 0.0
      %2142 = vmatpush.msra.mxu0 %v2118
      %2143 = vmatmul.f32.gmra.mxu0 %v2125
      %v2144 = vpop.f32.mrf.mxu0
      %v2145 = vadd.f32 %v2121, %v2144
      %2146 = vdwg.mxu0
      %v2148 = vrot.slane %v2145, 2
      %v2150 = vadd.f32 %v2145, %v2148
      %v2151 = vxor.u32 %v2150, 2147483648
      %v2152 = vmul.f32 %v2151, 1.442695
      %v2153 = vpow.pop %v2152
      %v2154 = vadd.f32 %v2153, 1.0
      %v2155 = vrcp.pop %v2154
      %v2156 = vmul.f32 %v2154, %v2155
      %v2157 = vsub.f32 1.0, %v2156
      %v2158 = vmul.f32 %v2155, %v2157
      %v2159 = vadd.f32 %v2155, %v2158
      %vm2160 = vweird.f32 %v2154
      %vm2161 = vweird.f32 %v2155
      %vm2162 = vmor %vm2160, %vm2161
      %v2163 = vsel %vm2162, %v2155, %v2159
      %v2164 = vand.u32 2147483647, %v2154
      %vm2165 = vcmp.eq.f32.partialorder %v2164, 8.507059e+37
      %v2166 = vand.u32 %v2154, 2147483648
      %v2167 = vor.u32 1.1754944e-38, %v2166
      %v2168 = vsel %vm2165, %v2167, %v2163
      %v2169 = vmul.f32 1.0, %v2168
      %vm2170 = vcmask 254976
      %2171 = vst.msk [vmem:[#allocation7] sm:$0x3] %vm2170, %v2169
    $region37: #{tpu_custom_call.1} parent=1 // pred_fallthru
      _
    // Predicated region
    $region38: #{tpu_custom_call.1} parent=1 // pred_check
      _
    $region39: #{tpu_custom_call.1} parent=1 // pred_check_branch
      %2173 = sbr.rel (0) target = $region41
    $region40: #{tpu_custom_call.1} parent=1 // pred_region
      %2175 = vsyncadd [#allocation6], 0
      %s2177 = sshll.u32 [#allocation7], 4
      %s2178 = int_to_ptr.vmem [resolvable:$true] %s2177
      %s2179 = sshll.u32 %s5, 4
      %s2180 = int_to_ptr.hbm [resolvable:$true] %s2179
      %2182 = dma.vmem_to_hbm [thread:$0]  %s2178, 32, %s2180, [#allocation6]
    $region41: #{tpu_custom_call.1} parent=1 // pred_fallthru
      _
    // Predicated region
    $region42: #{tpu_custom_call.1} parent=1 // pred_check
      _
    $region43: #{tpu_custom_call.1} parent=1 // pred_check_branch
      %2184 = sbr.rel (0) target = $region45
    $region44: #{tpu_custom_call.1} parent=1 // pred_region
      %2186 = dma.done [#allocation6], 32
    $region45: #{tpu_custom_call.1} parent=1 // pred_fallthru
      _
    %2187 = vsyncpa [#allocation5], 1
    %2188 = vsyncpa [#allocation6], 1

</llo_original>
